<compile_context>
chip_gen: v5e
topology: v5e:2x2
jax: 0.10.0
libtpu: 0.0.40
codegen_flags: <defaults>
</compile_context>

<pallas_src>
import functools

import jax
import jax.numpy as jnp
import numpy as np
from jax import lax
from jax.experimental import pallas as pl
from jax.experimental.pallas import tpu as pltpu

_EPS = 1e-5
_INV_SQRT2 = 0.7071067811865476


def _gelu_exact(v):
    return 0.5 * v * (1.0 + lax.erf(v * _INV_SQRT2))


def _residual_block_kernel(x_ref, w1_ref, w2_ref, bn_ref, out_ref, *, H, W):
    """Whole forward pass in one invocation (shapes are tiny).

    x_ref  : (C, N*H*W)   activations; row = channel, col = (n, h, w)
    w*_ref : (C, 9*C)     concatenated per-tap channel mixers (tap k = ky*3+kx
                          occupies columns [k*C, (k+1)*C))
    bn_ref : (C, 4)       packed [gamma1, beta1, gamma2, beta2]
    out_ref: (C, N*H*W)
    """
    C, NHW = x_ref.shape
    HW = H * W
    inv_count = 1.0 / float(NHW)          # 1 / (N*H*W)

    x = x_ref[...].astype(jnp.float32)

    # ---- static 3x3 tap shifts + boundary masks (built once, reused) -------
    # Per-image (h, w) coordinate of every lane; the masks kill both the image
    # edge taps and any cross-image / end-of-axis wrap introduced by the roll.
    col = lax.broadcasted_iota(jnp.int32, (1, NHW), 1)
    if (HW & (HW - 1)) == 0 and (W & (W - 1)) == 0:   # fast path: powers of 2
        pos = col & (HW - 1)
        w_id = pos & (W - 1)
        h_id = pos >> (W.bit_length() - 1)
    else:
        pos = col % HW
        w_id = pos % W
        h_id = pos // W

    shifts, masks = [], []
    for ky in range(3):
        for kx in range(3):
            dy, dx = ky - 1, kx - 1
            shifts.append((-(dy * W + dx)) % NHW)
            conds = []
            if dy < 0:
                conds.append(h_id >= -dy)
            elif dy > 0:
                conds.append(h_id < H - dy)
            if dx < 0:
                conds.append(w_id >= -dx)
            elif dx > 0:
                conds.append(w_id < W - dx)
            m = None
            for c in conds:
                m = c if m is None else m & c
            masks.append(m)                 # None for the center tap

    def conv_bn(inp, w_ref, gamma, beta):
        # 3x3 "same" conv as ONE deep matmul: stack the 9 shifted+masked slabs
        # along the contraction axis (K = 9*C) and multiply by the
        # pre-concatenated (C, 9*C) tap mixer.  Rolls -> XLU, masks -> VPU,
        # a single MXU push/pop instead of 9 shallow dots + 8 adds.
        # (Optionally the stacked slab / mixer could be cast to bf16 for fewer
        # MXU passes on v5e; kept f32 here to preserve the validated numerics.)
        parts = []
        for k in range(9):
            s = inp if shifts[k] == 0 else pltpu.roll(inp, shifts[k], axis=1)
            if masks[k] is not None:
                s = jnp.where(masks[k], s, 0.0)
            parts.append(s)
        stacked = jnp.concatenate(parts, axis=0)            # (9*C, NHW)
        acc = jnp.dot(w_ref[...], stacked,
                      preferred_element_type=jnp.float32)   # (C, NHW)

        # BatchNorm2d, training-mode batch stats (biased variance).  Rows are
        # channels, so mean / var are pure lane reductions (no group matmuls).
        # Conv bias is omitted: BN's mean subtraction cancels it exactly.
        mean = jnp.sum(acc, axis=1, keepdims=True) * inv_count
        centered = acc - mean
        var = jnp.sum(centered * centered, axis=1, keepdims=True) * inv_count
        scale = gamma * lax.rsqrt(var + _EPS)
        return centered * scale + beta

    bn = bn_ref[...]                                         # (C, 4)
    g1, be1, g2, be2 = bn[:, 0:1], bn[:, 1:2], bn[:, 2:3], bn[:, 3:4]

    h1 = _gelu_exact(conv_bn(x, w1_ref, g1, be1))
    y = conv_bn(h1, w2_ref, g2, be2)
    out_ref[...] = _gelu_exact(x + y).astype(out_ref.dtype)


def _padded_vmem_bytes(shape, itemsize=4):
    """Bytes of a 2-D operand after (8, 128) tile padding."""
    r, c = shape
    return (-(-r // 8) * 8) * (-(-c // 128) * 128) * itemsize


def residual_block(x_nchw, params):
    """NCHW in / NCHW out.  Kernel runs on a channel-major (C, N*H*W) slab."""
    N, C, H, W = x_nchw.shape
    NHW = N * H * W
    # PyTorch-native param layouts.  Conv biases (b1, b2) are NOT passed to the
    # kernel: under training-mode BatchNorm they are absorbed into the batch
    # mean and cancel exactly.
    w1, b1, g1, be1, w2, b2, g2, be2 = params
    del b1, b2

    def cat_taps(w_oihw):
        # (C_out, C_in, 3, 3) -> (C_out, 9*C_in): tap k = ky*3 + kx occupies
        # columns [k*C_in, (k+1)*C_in), matching the kernel's stacked RHS.
        w = jnp.transpose(w_oihw.astype(jnp.float32), (0, 2, 3, 1))  # (O,3,3,I)
        return w.reshape(C, 9 * C)

    bn = jnp.stack([g1, be1, g2, be2], axis=1).astype(jnp.float32)   # (C, 4)

    # Channel-major slab (layout plumbing outside the kernel).
    x_cm = jnp.transpose(x_nchw, (1, 0, 2, 3)).reshape(C, NHW)

    args = (x_cm, cat_taps(w1), cat_taps(w2), bn)

    full = lambda a: pl.BlockSpec(a.shape, lambda i, nd=a.ndim: (0,) * nd)
    kernel = functools.partial(_residual_block_kernel, H=H, W=W)

    matmul_flops = 2 * (2 * C * (9 * C) * NHW)          # two fused-tap convs
    ew_flops = 40 * C * NHW                             # masks, BN, residual, gelu poly
    bytes_accessed = (sum(_padded_vmem_bytes(a.shape) for a in args)
                      + _padded_vmem_bytes((C, NHW)))

    # NOTE(scaling): at realistic shapes add a "parallel" grid axis (v7x has
    # 2 TensorCores) — e.g. spatial tiles with BN partial sums finalized via
    # pl.when on a trailing "arbitrary" axis, or split the two convs into two
    # pallas_calls tiled over output channels — and re-derive tile sizes for
    # v7x's 64 MiB VMEM (set vmem_limit_bytes explicitly, keep >=512 lanes per
    # tile).  At this toy size a single invocation on one core wins.
    out = pl.pallas_call(
        kernel,
        out_shape=jax.ShapeDtypeStruct((C, NHW), x_nchw.dtype),
        grid_spec=pl.GridSpec(
            grid=(1,),
            in_specs=[full(a) for a in args],
            out_specs=pl.BlockSpec((C, NHW), lambda i: (0, 0)),
        ),
        compiler_params=pltpu.CompilerParams(
            dimension_semantics=("arbitrary",)),
        cost_estimate=pl.CostEstimate(
            flops=matmul_flops + ew_flops,
            transcendentals=2 * C * NHW,
            bytes_accessed=bytes_accessed),
    )(*args)
    return jnp.transpose(out.reshape(C, N, H, W), (1, 0, 2, 3))


def _reference_nchw(x, params):
    """Pure-JAX reference (correctness checking only; keeps the conv bias)."""
    w1, b1, g1, be1, w2, b2, g2, be2 = params

    def conv_bn(h, w, b, g, be):
        y = lax.conv_general_dilated(
            h, w, window_strides=(1, 1), padding="SAME",
            dimension_numbers=("NCHW", "OIHW", "NCHW"))
        y = y + b.reshape(1, -1, 1, 1)
        mean = y.mean(axis=(0, 2, 3), keepdims=True)
        var = ((y - mean) ** 2).mean(axis=(0, 2, 3), keepdims=True)
        y = (y - mean) / jnp.sqrt(var + _EPS)
        return y * g.reshape(1, -1, 1, 1) + be.reshape(1, -1, 1, 1)

    h = jax.nn.gelu(conv_bn(x, w1, b1, g1, be1), approximate=False)
    y = conv_bn(h, w2, b2, g2, be2)
    return jax.nn.gelu(x + y, approximate=False)


def init_params(key, C):
    """Deterministic synthetic parameters (PyTorch-native layouts)."""
    k1, k2, k3, k4 = jax.random.split(key, 4)
    w1 = jax.random.normal(k1, (C, C, 3, 3), jnp.float32) * 0.1
    w2 = jax.random.normal(k2, (C, C, 3, 3), jnp.float32) * 0.1
    b1 = jax.random.normal(k3, (C,), jnp.float32) * 0.05
    b2 = jax.random.normal(k4, (C,), jnp.float32) * 0.05
    # BatchNorm2d default init: gamma=1, beta=0.
    g1 = jnp.ones((C,), jnp.float32)
    be1 = jnp.zeros((C,), jnp.float32)
    g2 = jnp.ones((C,), jnp.float32)
    be2 = jnp.zeros((C,), jnp.float32)
    return (w1, b1, g1, be1, w2, b2, g2, be2)


if __name__ == "__main__":
    N, C, H, W = 2, 4, 16, 16
    key = jax.random.PRNGKey(0)
    kx, kp = jax.random.split(key)
    x_nchw = jax.random.normal(kx, (N, C, H, W), jnp.float32)
    params = init_params(kp, C)

    out = jax.block_until_ready(residual_block(x_nchw, params))

    ref = _reference_nchw(x_nchw, params)
    np.testing.assert_allclose(np.asarray(out), np.asarray(ref),
                               rtol=2e-4, atol=2e-4)
    print("KERNEL_OK")
</pallas_src>

<mosaic_0001>
module attributes {stable_mosaic.version = 11 : i64} {
  func.func @_residual_block_kernel(%arg0: i32, %arg1: memref<4x512xf32, #tpu.memory_space<vmem>>, %arg2: memref<4x36xf32, #tpu.memory_space<vmem>>, %arg3: memref<4x36xf32, #tpu.memory_space<vmem>>, %arg4: memref<4x4xf32, #tpu.memory_space<vmem>>, %arg5: memref<4x512xf32, #tpu.memory_space<vmem>>) attributes {dimension_semantics = [#tpu.dimension_semantics<arbitrary>], iteration_bounds = array<i64: 1>, scalar_prefetch = 0 : i64, scratch_operands = 0 : i64, tpu.core_type = #tpu.core_type<tc>, window_params = [{pipeline_mode = #tpu.pipeline_mode<synchronous>, transform_indices = @transform_0, window_bounds = array<i64: 4, 512>}, {pipeline_mode = #tpu.pipeline_mode<synchronous>, transform_indices = @transform_1, window_bounds = array<i64: 4, 36>}, {pipeline_mode = #tpu.pipeline_mode<synchronous>, transform_indices = @transform_2, window_bounds = array<i64: 4, 36>}, {pipeline_mode = #tpu.pipeline_mode<synchronous>, transform_indices = @transform_3, window_bounds = array<i64: 4, 4>}, {pipeline_mode = #tpu.pipeline_mode<synchronous>, transform_indices = @transform_4, window_bounds = array<i64: 4, 512>}]} {
    %c0 = arith.constant 0 : index
    %c0_0 = arith.constant 0 : index
    %0 = vector.load %arg1[%c0, %c0_0] : memref<4x512xf32, #tpu.memory_space<vmem>>, vector<4x512xf32>
    %1 = tpu.iota {dimensions = array<i32: 1>} : vector<1x512xi32>
    %c255_i32 = arith.constant 255 : i32
    %2 = vector.broadcast %c255_i32 : i32 to vector<1x512xi32>
    %3 = arith.andi %1, %2 : vector<1x512xi32>
    %c15_i32 = arith.constant 15 : i32
    %4 = vector.broadcast %c15_i32 : i32 to vector<1x512xi32>
    %5 = arith.andi %3, %4 : vector<1x512xi32>
    %c4_i32 = arith.constant 4 : i32
    %6 = vector.broadcast %c4_i32 : i32 to vector<1x512xi32>
    %7 = arith.shrsi %3, %6 : vector<1x512xi32>
    %c1_i32 = arith.constant 1 : i32
    %8 = vector.broadcast %c1_i32 : i32 to vector<1x512xi32>
    %9 = arith.cmpi sge, %7, %8 : vector<1x512xi32>
    %c1_i32_1 = arith.constant 1 : i32
    %10 = vector.broadcast %c1_i32_1 : i32 to vector<1x512xi32>
    %11 = arith.cmpi sge, %5, %10 : vector<1x512xi32>
    %12 = arith.andi %9, %11 : vector<1x512xi1>
    %c1_i32_2 = arith.constant 1 : i32
    %13 = vector.broadcast %c1_i32_2 : i32 to vector<1x512xi32>
    %14 = arith.cmpi sge, %7, %13 : vector<1x512xi32>
    %c1_i32_3 = arith.constant 1 : i32
    %15 = vector.broadcast %c1_i32_3 : i32 to vector<1x512xi32>
    %16 = arith.cmpi sge, %7, %15 : vector<1x512xi32>
    %c15_i32_4 = arith.constant 15 : i32
    %17 = vector.broadcast %c15_i32_4 : i32 to vector<1x512xi32>
    %18 = arith.cmpi slt, %5, %17 : vector<1x512xi32>
    %19 = arith.andi %16, %18 : vector<1x512xi1>
    %c1_i32_5 = arith.constant 1 : i32
    %20 = vector.broadcast %c1_i32_5 : i32 to vector<1x512xi32>
    %21 = arith.cmpi sge, %5, %20 : vector<1x512xi32>
    %c15_i32_6 = arith.constant 15 : i32
    %22 = vector.broadcast %c15_i32_6 : i32 to vector<1x512xi32>
    %23 = arith.cmpi slt, %5, %22 : vector<1x512xi32>
    %c15_i32_7 = arith.constant 15 : i32
    %24 = vector.broadcast %c15_i32_7 : i32 to vector<1x512xi32>
    %25 = arith.cmpi slt, %7, %24 : vector<1x512xi32>
    %c1_i32_8 = arith.constant 1 : i32
    %26 = vector.broadcast %c1_i32_8 : i32 to vector<1x512xi32>
    %27 = arith.cmpi sge, %5, %26 : vector<1x512xi32>
    %28 = arith.andi %25, %27 : vector<1x512xi1>
    %c15_i32_9 = arith.constant 15 : i32
    %29 = vector.broadcast %c15_i32_9 : i32 to vector<1x512xi32>
    %30 = arith.cmpi slt, %7, %29 : vector<1x512xi32>
    %c15_i32_10 = arith.constant 15 : i32
    %31 = vector.broadcast %c15_i32_10 : i32 to vector<1x512xi32>
    %32 = arith.cmpi slt, %7, %31 : vector<1x512xi32>
    %c15_i32_11 = arith.constant 15 : i32
    %33 = vector.broadcast %c15_i32_11 : i32 to vector<1x512xi32>
    %34 = arith.cmpi slt, %5, %33 : vector<1x512xi32>
    %35 = arith.andi %32, %34 : vector<1x512xi1>
    %c0_12 = arith.constant 0 : index
    %c0_13 = arith.constant 0 : index
    %36 = vector.load %arg4[%c0_12, %c0_13] : memref<4x4xf32, #tpu.memory_space<vmem>>, vector<4x4xf32>
    %37 = vector.extract_strided_slice %36 {offsets = [0, 0], sizes = [4, 1], strides = [1, 1]} : vector<4x4xf32> to vector<4x1xf32>
    %38 = vector.extract_strided_slice %36 {offsets = [0, 1], sizes = [4, 1], strides = [1, 1]} : vector<4x4xf32> to vector<4x1xf32>
    %39 = vector.extract_strided_slice %36 {offsets = [0, 2], sizes = [4, 1], strides = [1, 1]} : vector<4x4xf32> to vector<4x1xf32>
    %40 = vector.extract_strided_slice %36 {offsets = [0, 3], sizes = [4, 1], strides = [1, 1]} : vector<4x4xf32> to vector<4x1xf32>
    %c17_i32 = arith.constant 17 : i32
    %41 = tpu.dynamic_rotate %0 by %c17_i32 dim 1 : vector<4x512xf32>, i32 -> vector<4x512xf32>
    %cst = arith.constant 0.000000e+00 : f32
    %42 = vector.shape_cast %12 : vector<1x512xi1> to vector<1x512xi1>
    %43 = vector.broadcast %42 : vector<1x512xi1> to vector<4x512xi1>
    %44 = vector.broadcast %cst : f32 to vector<4x512xf32>
    %45 = arith.select %43, %41, %44 : vector<4x512xi1>, vector<4x512xf32>
    %c16_i32 = arith.constant 16 : i32
    %46 = tpu.dynamic_rotate %0 by %c16_i32 dim 1 : vector<4x512xf32>, i32 -> vector<4x512xf32>
    %cst_14 = arith.constant 0.000000e+00 : f32
    %47 = vector.shape_cast %14 : vector<1x512xi1> to vector<1x512xi1>
    %48 = vector.broadcast %47 : vector<1x512xi1> to vector<4x512xi1>
    %49 = vector.broadcast %cst_14 : f32 to vector<4x512xf32>
    %50 = arith.select %48, %46, %49 : vector<4x512xi1>, vector<4x512xf32>
    %c15_i32_15 = arith.constant 15 : i32
    %51 = tpu.dynamic_rotate %0 by %c15_i32_15 dim 1 : vector<4x512xf32>, i32 -> vector<4x512xf32>
    %cst_16 = arith.constant 0.000000e+00 : f32
    %52 = vector.shape_cast %19 : vector<1x512xi1> to vector<1x512xi1>
    %53 = vector.broadcast %52 : vector<1x512xi1> to vector<4x512xi1>
    %54 = vector.broadcast %cst_16 : f32 to vector<4x512xf32>
    %55 = arith.select %53, %51, %54 : vector<4x512xi1>, vector<4x512xf32>
    %c1_i32_17 = arith.constant 1 : i32
    %56 = tpu.dynamic_rotate %0 by %c1_i32_17 dim 1 : vector<4x512xf32>, i32 -> vector<4x512xf32>
    %cst_18 = arith.constant 0.000000e+00 : f32
    %57 = vector.shape_cast %21 : vector<1x512xi1> to vector<1x512xi1>
    %58 = vector.broadcast %57 : vector<1x512xi1> to vector<4x512xi1>
    %59 = vector.broadcast %cst_18 : f32 to vector<4x512xf32>
    %60 = arith.select %58, %56, %59 : vector<4x512xi1>, vector<4x512xf32>
    %c511_i32 = arith.constant 511 : i32
    %61 = tpu.dynamic_rotate %0 by %c511_i32 dim 1 : vector<4x512xf32>, i32 -> vector<4x512xf32>
    %cst_19 = arith.constant 0.000000e+00 : f32
    %62 = vector.shape_cast %23 : vector<1x512xi1> to vector<1x512xi1>
    %63 = vector.broadcast %62 : vector<1x512xi1> to vector<4x512xi1>
    %64 = vector.broadcast %cst_19 : f32 to vector<4x512xf32>
    %65 = arith.select %63, %61, %64 : vector<4x512xi1>, vector<4x512xf32>
    %c497_i32 = arith.constant 497 : i32
    %66 = tpu.dynamic_rotate %0 by %c497_i32 dim 1 : vector<4x512xf32>, i32 -> vector<4x512xf32>
    %cst_20 = arith.constant 0.000000e+00 : f32
    %67 = vector.shape_cast %28 : vector<1x512xi1> to vector<1x512xi1>
    %68 = vector.broadcast %67 : vector<1x512xi1> to vector<4x512xi1>
    %69 = vector.broadcast %cst_20 : f32 to vector<4x512xf32>
    %70 = arith.select %68, %66, %69 : vector<4x512xi1>, vector<4x512xf32>
    %c496_i32 = arith.constant 496 : i32
    %71 = tpu.dynamic_rotate %0 by %c496_i32 dim 1 : vector<4x512xf32>, i32 -> vector<4x512xf32>
    %cst_21 = arith.constant 0.000000e+00 : f32
    %72 = vector.shape_cast %30 : vector<1x512xi1> to vector<1x512xi1>
    %73 = vector.broadcast %72 : vector<1x512xi1> to vector<4x512xi1>
    %74 = vector.broadcast %cst_21 : f32 to vector<4x512xf32>
    %75 = arith.select %73, %71, %74 : vector<4x512xi1>, vector<4x512xf32>
    %c495_i32 = arith.constant 495 : i32
    %76 = tpu.dynamic_rotate %0 by %c495_i32 dim 1 : vector<4x512xf32>, i32 -> vector<4x512xf32>
    %cst_22 = arith.constant 0.000000e+00 : f32
    %77 = vector.shape_cast %35 : vector<1x512xi1> to vector<1x512xi1>
    %78 = vector.broadcast %77 : vector<1x512xi1> to vector<4x512xi1>
    %79 = vector.broadcast %cst_22 : f32 to vector<4x512xf32>
    %80 = arith.select %78, %76, %79 : vector<4x512xi1>, vector<4x512xf32>
    %81 = tpu.concatenate %45, %50, %55, %60, %0, %65, %70, %75, %80 in 0 : vector<4x512xf32>, vector<4x512xf32>, vector<4x512xf32>, vector<4x512xf32>, vector<4x512xf32>, vector<4x512xf32>, vector<4x512xf32>, vector<4x512xf32>, vector<4x512xf32> -> vector<36x512xf32>
    %c0_23 = arith.constant 0 : index
    %c0_24 = arith.constant 0 : index
    %82 = vector.load %arg2[%c0_23, %c0_24] : memref<4x36xf32, #tpu.memory_space<vmem>>, vector<4x36xf32>
    %cst_25 = arith.constant dense<0.000000e+00> : vector<4x512xf32>
    %83 = tpu.matmul %82, %81, %cst_25 {dimension_numbers = #tpu.dot_dimension_numbers<[1], [0], [0], [1], [0, 0, 1, 1], [], []>} : vector<4x36xf32>, vector<36x512xf32>, vector<4x512xf32> -> vector<4x512xf32>
    %cst_26 = arith.constant dense<0.000000e+00> : vector<4xf32>
    %84 = vector.multi_reduction <add>, %83, %cst_26 [1] : vector<4x512xf32> to vector<4xf32>
    %85 = vector.shape_cast %84 : vector<4xf32> to vector<4x1xf32>
    %cst_27 = arith.constant 0.001953125 : f32
    %86 = vector.broadcast %cst_27 : f32 to vector<4x1xf32>
    %87 = arith.mulf %85, %86 : vector<4x1xf32>
    %88 = vector.broadcast %87 : vector<4x1xf32> to vector<4x512xf32>
    %89 = arith.subf %83, %88 : vector<4x512xf32>
    %90 = arith.mulf %89, %89 : vector<4x512xf32>
    %cst_28 = arith.constant dense<0.000000e+00> : vector<4xf32>
    %91 = vector.multi_reduction <add>, %90, %cst_28 [1] : vector<4x512xf32> to vector<4xf32>
    %92 = vector.shape_cast %91 : vector<4xf32> to vector<4x1xf32>
    %cst_29 = arith.constant 0.001953125 : f32
    %93 = vector.broadcast %cst_29 : f32 to vector<4x1xf32>
    %94 = arith.mulf %92, %93 : vector<4x1xf32>
    %cst_30 = arith.constant 9.99999974E-6 : f32
    %95 = vector.broadcast %cst_30 : f32 to vector<4x1xf32>
    %96 = arith.addf %94, %95 : vector<4x1xf32>
    %97 = math.rsqrt %96 : vector<4x1xf32>
    %98 = arith.mulf %37, %97 : vector<4x1xf32>
    %99 = vector.broadcast %98 : vector<4x1xf32> to vector<4x512xf32>
    %100 = arith.mulf %89, %99 : vector<4x512xf32>
    %101 = vector.broadcast %38 : vector<4x1xf32> to vector<4x512xf32>
    %102 = arith.addf %100, %101 : vector<4x512xf32>
    %cst_31 = arith.constant 5.000000e-01 : f32
    %103 = vector.broadcast %cst_31 : f32 to vector<4x512xf32>
    %104 = arith.mulf %103, %102 : vector<4x512xf32>
    %cst_32 = arith.constant 0.707106769 : f32
    %105 = vector.broadcast %cst_32 : f32 to vector<4x512xf32>
    %106 = arith.mulf %102, %105 : vector<4x512xf32>
    %107 = math.erf %106 : vector<4x512xf32>
    %cst_33 = arith.constant 1.000000e+00 : f32
    %108 = vector.broadcast %cst_33 : f32 to vector<4x512xf32>
    %109 = arith.addf %108, %107 : vector<4x512xf32>
    %110 = arith.mulf %104, %109 : vector<4x512xf32>
    %c17_i32_34 = arith.constant 17 : i32
    %111 = tpu.dynamic_rotate %110 by %c17_i32_34 dim 1 : vector<4x512xf32>, i32 -> vector<4x512xf32>
    %cst_35 = arith.constant 0.000000e+00 : f32
    %112 = vector.shape_cast %12 : vector<1x512xi1> to vector<1x512xi1>
    %113 = vector.broadcast %112 : vector<1x512xi1> to vector<4x512xi1>
    %114 = vector.broadcast %cst_35 : f32 to vector<4x512xf32>
    %115 = arith.select %113, %111, %114 : vector<4x512xi1>, vector<4x512xf32>
    %c16_i32_36 = arith.constant 16 : i32
    %116 = tpu.dynamic_rotate %110 by %c16_i32_36 dim 1 : vector<4x512xf32>, i32 -> vector<4x512xf32>
    %cst_37 = arith.constant 0.000000e+00 : f32
    %117 = vector.shape_cast %14 : vector<1x512xi1> to vector<1x512xi1>
    %118 = vector.broadcast %117 : vector<1x512xi1> to vector<4x512xi1>
    %119 = vector.broadcast %cst_37 : f32 to vector<4x512xf32>
    %120 = arith.select %118, %116, %119 : vector<4x512xi1>, vector<4x512xf32>
    %c15_i32_38 = arith.constant 15 : i32
    %121 = tpu.dynamic_rotate %110 by %c15_i32_38 dim 1 : vector<4x512xf32>, i32 -> vector<4x512xf32>
    %cst_39 = arith.constant 0.000000e+00 : f32
    %122 = vector.shape_cast %19 : vector<1x512xi1> to vector<1x512xi1>
    %123 = vector.broadcast %122 : vector<1x512xi1> to vector<4x512xi1>
    %124 = vector.broadcast %cst_39 : f32 to vector<4x512xf32>
    %125 = arith.select %123, %121, %124 : vector<4x512xi1>, vector<4x512xf32>
    %c1_i32_40 = arith.constant 1 : i32
    %126 = tpu.dynamic_rotate %110 by %c1_i32_40 dim 1 : vector<4x512xf32>, i32 -> vector<4x512xf32>
    %cst_41 = arith.constant 0.000000e+00 : f32
    %127 = vector.shape_cast %21 : vector<1x512xi1> to vector<1x512xi1>
    %128 = vector.broadcast %127 : vector<1x512xi1> to vector<4x512xi1>
    %129 = vector.broadcast %cst_41 : f32 to vector<4x512xf32>
    %130 = arith.select %128, %126, %129 : vector<4x512xi1>, vector<4x512xf32>
    %c511_i32_42 = arith.constant 511 : i32
    %131 = tpu.dynamic_rotate %110 by %c511_i32_42 dim 1 : vector<4x512xf32>, i32 -> vector<4x512xf32>
    %cst_43 = arith.constant 0.000000e+00 : f32
    %132 = vector.shape_cast %23 : vector<1x512xi1> to vector<1x512xi1>
    %133 = vector.broadcast %132 : vector<1x512xi1> to vector<4x512xi1>
    %134 = vector.broadcast %cst_43 : f32 to vector<4x512xf32>
    %135 = arith.select %133, %131, %134 : vector<4x512xi1>, vector<4x512xf32>
    %c497_i32_44 = arith.constant 497 : i32
    %136 = tpu.dynamic_rotate %110 by %c497_i32_44 dim 1 : vector<4x512xf32>, i32 -> vector<4x512xf32>
    %cst_45 = arith.constant 0.000000e+00 : f32
    %137 = vector.shape_cast %28 : vector<1x512xi1> to vector<1x512xi1>
    %138 = vector.broadcast %137 : vector<1x512xi1> to vector<4x512xi1>
    %139 = vector.broadcast %cst_45 : f32 to vector<4x512xf32>
    %140 = arith.select %138, %136, %139 : vector<4x512xi1>, vector<4x512xf32>
    %c496_i32_46 = arith.constant 496 : i32
    %141 = tpu.dynamic_rotate %110 by %c496_i32_46 dim 1 : vector<4x512xf32>, i32 -> vector<4x512xf32>
    %cst_47 = arith.constant 0.000000e+00 : f32
    %142 = vector.shape_cast %30 : vector<1x512xi1> to vector<1x512xi1>
    %143 = vector.broadcast %142 : vector<1x512xi1> to vector<4x512xi1>
    %144 = vector.broadcast %cst_47 : f32 to vector<4x512xf32>
    %145 = arith.select %143, %141, %144 : vector<4x512xi1>, vector<4x512xf32>
    %c495_i32_48 = arith.constant 495 : i32
    %146 = tpu.dynamic_rotate %110 by %c495_i32_48 dim 1 : vector<4x512xf32>, i32 -> vector<4x512xf32>
    %cst_49 = arith.constant 0.000000e+00 : f32
    %147 = vector.shape_cast %35 : vector<1x512xi1> to vector<1x512xi1>
    %148 = vector.broadcast %147 : vector<1x512xi1> to vector<4x512xi1>
    %149 = vector.broadcast %cst_49 : f32 to vector<4x512xf32>
    %150 = arith.select %148, %146, %149 : vector<4x512xi1>, vector<4x512xf32>
    %151 = tpu.concatenate %115, %120, %125, %130, %110, %135, %140, %145, %150 in 0 : vector<4x512xf32>, vector<4x512xf32>, vector<4x512xf32>, vector<4x512xf32>, vector<4x512xf32>, vector<4x512xf32>, vector<4x512xf32>, vector<4x512xf32>, vector<4x512xf32> -> vector<36x512xf32>
    %c0_50 = arith.constant 0 : index
    %c0_51 = arith.constant 0 : index
    %152 = vector.load %arg3[%c0_50, %c0_51] : memref<4x36xf32, #tpu.memory_space<vmem>>, vector<4x36xf32>
    %cst_52 = arith.constant dense<0.000000e+00> : vector<4x512xf32>
    %153 = tpu.matmul %152, %151, %cst_52 {dimension_numbers = #tpu.dot_dimension_numbers<[1], [0], [0], [1], [0, 0, 1, 1], [], []>} : vector<4x36xf32>, vector<36x512xf32>, vector<4x512xf32> -> vector<4x512xf32>
    %cst_53 = arith.constant dense<0.000000e+00> : vector<4xf32>
    %154 = vector.multi_reduction <add>, %153, %cst_53 [1] : vector<4x512xf32> to vector<4xf32>
    %155 = vector.shape_cast %154 : vector<4xf32> to vector<4x1xf32>
    %cst_54 = arith.constant 0.001953125 : f32
    %156 = vector.broadcast %cst_54 : f32 to vector<4x1xf32>
    %157 = arith.mulf %155, %156 : vector<4x1xf32>
    %158 = vector.broadcast %157 : vector<4x1xf32> to vector<4x512xf32>
    %159 = arith.subf %153, %158 : vector<4x512xf32>
    %160 = arith.mulf %159, %159 : vector<4x512xf32>
    %cst_55 = arith.constant dense<0.000000e+00> : vector<4xf32>
    %161 = vector.multi_reduction <add>, %160, %cst_55 [1] : vector<4x512xf32> to vector<4xf32>
    %162 = vector.shape_cast %161 : vector<4xf32> to vector<4x1xf32>
    %cst_56 = arith.constant 0.001953125 : f32
    %163 = vector.broadcast %cst_56 : f32 to vector<4x1xf32>
    %164 = arith.mulf %162, %163 : vector<4x1xf32>
    %cst_57 = arith.constant 9.99999974E-6 : f32
    %165 = vector.broadcast %cst_57 : f32 to vector<4x1xf32>
    %166 = arith.addf %164, %165 : vector<4x1xf32>
    %167 = math.rsqrt %166 : vector<4x1xf32>
    %168 = arith.mulf %39, %167 : vector<4x1xf32>
    %169 = vector.broadcast %168 : vector<4x1xf32> to vector<4x512xf32>
    %170 = arith.mulf %159, %169 : vector<4x512xf32>
    %171 = vector.broadcast %40 : vector<4x1xf32> to vector<4x512xf32>
    %172 = arith.addf %170, %171 : vector<4x512xf32>
    %173 = arith.addf %0, %172 : vector<4x512xf32>
    %cst_58 = arith.constant 5.000000e-01 : f32
    %174 = vector.broadcast %cst_58 : f32 to vector<4x512xf32>
    %175 = arith.mulf %174, %173 : vector<4x512xf32>
    %cst_59 = arith.constant 0.707106769 : f32
    %176 = vector.broadcast %cst_59 : f32 to vector<4x512xf32>
    %177 = arith.mulf %173, %176 : vector<4x512xf32>
    %178 = math.erf %177 : vector<4x512xf32>
    %cst_60 = arith.constant 1.000000e+00 : f32
    %179 = vector.broadcast %cst_60 : f32 to vector<4x512xf32>
    %180 = arith.addf %179, %178 : vector<4x512xf32>
    %181 = arith.mulf %175, %180 : vector<4x512xf32>
    %c0_61 = arith.constant 0 : index
    %c0_62 = arith.constant 0 : index
    %182 = vector.load %arg5[%c0_61, %c0_62] : memref<4x512xf32, #tpu.memory_space<vmem>>, vector<4x512xf32>
    tpu.vector_store %arg5[%c0_61, %c0_62], %181 {strides = array<i32>} : memref<4x512xf32, #tpu.memory_space<vmem>>, vector<4x512xf32>,
    return
  }
  func.func @transform_0(%arg0: i32) -> (i32, i32) {
    %c0_i32 = arith.constant 0 : i32
    %c0_i32_0 = arith.constant 0 : i32
    %c0_i32_1 = arith.constant 0 : i32
    return %c0_i32, %c0_i32_0 : i32, i32
  }
  func.func @transform_1(%arg0: i32) -> (i32, i32) {
    %c0_i32 = arith.constant 0 : i32
    %c0_i32_0 = arith.constant 0 : i32
    %c0_i32_1 = arith.constant 0 : i32
    return %c0_i32, %c0_i32_0 : i32, i32
  }
  func.func @transform_2(%arg0: i32) -> (i32, i32) {
    %c0_i32 = arith.constant 0 : i32
    %c0_i32_0 = arith.constant 0 : i32
    %c0_i32_1 = arith.constant 0 : i32
    return %c0_i32, %c0_i32_0 : i32, i32
  }
  func.func @transform_3(%arg0: i32) -> (i32, i32) {
    %c0_i32 = arith.constant 0 : i32
    %c0_i32_0 = arith.constant 0 : i32
    %c0_i32_1 = arith.constant 0 : i32
    return %c0_i32, %c0_i32_0 : i32, i32
  }
  func.func @transform_4(%arg0: i32) -> (i32, i32) {
    %c0_i32 = arith.constant 0 : i32
    %c0_i32_0 = arith.constant 0 : i32
    %c0_i32_1 = arith.constant 0 : i32
    return %c0_i32, %c0_i32_0 : i32, i32
  }
}

</mosaic_0001>

<llo_original>
// kernel: tpu_custom_call.1
$region0: #{tpu_custom_call.1}
  #allocation0 [shape = 'u32[]', space=smem, size = 0x4, offset = 0x4, fixed_abs, tag = 'smem constant byte address 0x4 - core index']
  #allocation1 [shape = 'u32[72,128]{1,0:T(1,128)}', space=vmem, size = 0x9000, scoped, tag = 'internal scratch']
  %s0 = inlined_call_operand.hbm [shape: f32[4,512], index: 0, kind: input, shape index: {}]
  %s1 = inlined_call_operand.hbm [shape: f32[4,36], index: 1, kind: input, shape index: {}]
  %s2 = inlined_call_operand.hbm [shape: f32[4,36], index: 2, kind: input, shape index: {}]
  %s3 = inlined_call_operand.hbm [shape: f32[4,4], index: 3, kind: input, shape index: {}]
  %s4 = inlined_call_operand.hbm [shape: f32[4,512], index: 4, kind: output, shape index: {}]
  %s5 = sld [smem:[#allocation0]]
  $region42: #{tpu_custom_call.1} parent=0
    _
  %s7 = ssub.s32 1, %s5
  %s8 = scalar_select 0, %s7, %s5
  $region1: #{tpu_custom_call.1} parent=0
    #allocation2 [shape = 'u8[8192]{0}', space=vmem, size = 0x2000, scoped, tag = 'input window, operand 0, single buffered']
    #allocation3 [shape = 's32[1]{0}', space=sflag, size = 0x4, scoped, tag = 'scoped memory for tpu_custom_call.1']
    #allocation4 [shape = 's32[1]{0}', space=sflag, size = 0x4, scoped, tag = 'scoped memory for tpu_custom_call.1']
    #allocation5 [shape = 'u8[2048]{0}', space=vmem, size = 0x800, scoped, tag = 'input window, operand 1, single buffered']
    #allocation6 [shape = 's32[1]{0}', space=sflag, size = 0x4, scoped, tag = 'scoped memory for tpu_custom_call.1']
    #allocation7 [shape = 'u8[2048]{0}', space=vmem, size = 0x800, scoped, tag = 'input window, operand 2, single buffered']
    #allocation8 [shape = 'u8[2048]{0}', space=vmem, size = 0x800, scoped, tag = 'input window, operand 3, single buffered']
    #allocation9 [shape = 's32[1]{0}', space=sflag, size = 0x4, scoped, tag = 'scoped memory for tpu_custom_call.1']
    #allocation10 [shape = 'u8[8192]{0}', space=vmem, size = 0x2000, scoped, tag = 'output window, operand 0, single buffered']
    %9 = vsyncpa [#allocation3], 0
    %10 = vsyncpa [#allocation6], 0
    %11 = vsyncpa [#allocation9], 0
    %12 = vsyncpa [#allocation4], 0
    // Predicated region
    $region2: #{tpu_custom_call.1} parent=1 // pred_check
      _
    $region3: #{tpu_custom_call.1} parent=1 // pred_check_branch
      %14 = sbr.rel (0) target = $region5
    $region4: #{tpu_custom_call.1} parent=1 // pred_region
      %16 = vsyncadd [#allocation3], 0
      %s18 = sshll.u32 %s0, 4
      %s19 = int_to_ptr.hbm [resolvable:$true] %s18
      %s20 = sshll.u32 [#allocation2], 4
      %s21 = int_to_ptr.vmem [resolvable:$true] %s20
      %23 = dma.hbm_to_vmem [thread:$0]  %s19, 256, %s21, [#allocation3]
    $region5: #{tpu_custom_call.1} parent=1 // pred_fallthru
      _
    // Predicated region
    $region6: #{tpu_custom_call.1} parent=1 // pred_check
      _
    $region7: #{tpu_custom_call.1} parent=1 // pred_check_branch
      %25 = sbr.rel (0) target = $region9
    $region8: #{tpu_custom_call.1} parent=1 // pred_region
      %27 = vsyncadd [#allocation6], 0
      %s29 = sshll.u32 %s1, 4
      %s30 = int_to_ptr.hbm [resolvable:$true] %s29
      %s31 = sshll.u32 [#allocation5], 4
      %s32 = int_to_ptr.vmem [resolvable:$true] %s31
      %34 = dma.hbm_to_vmem [thread:$0]  %s30, 64, %s32, [#allocation6]
    $region9: #{tpu_custom_call.1} parent=1 // pred_fallthru
      _
    // Predicated region
    $region10: #{tpu_custom_call.1} parent=1 // pred_check
      _
    $region11: #{tpu_custom_call.1} parent=1 // pred_check_branch
      %36 = sbr.rel (0) target = $region13
    $region12: #{tpu_custom_call.1} parent=1 // pred_region
      %38 = vsyncadd [#allocation6], 0
      %s40 = sshll.u32 %s2, 4
      %s41 = int_to_ptr.hbm [resolvable:$true] %s40
      %s42 = sshll.u32 [#allocation7], 4
      %s43 = int_to_ptr.vmem [resolvable:$true] %s42
      %45 = dma.hbm_to_vmem [thread:$0]  %s41, 64, %s43, [#allocation6]
    $region13: #{tpu_custom_call.1} parent=1 // pred_fallthru
      _
    // Predicated region
    $region14: #{tpu_custom_call.1} parent=1 // pred_check
      _
    $region15: #{tpu_custom_call.1} parent=1 // pred_check_branch
      %47 = sbr.rel (0) target = $region17
    $region16: #{tpu_custom_call.1} parent=1 // pred_region
      %49 = vsyncadd [#allocation9], 0
      %s51 = sshll.u32 %s3, 4
      %s52 = int_to_ptr.hbm [resolvable:$true] %s51
      %s53 = sshll.u32 [#allocation8], 4
      %s54 = int_to_ptr.vmem [resolvable:$true] %s53
      %56 = dma.hbm_to_vmem [thread:$0]  %s52, 64, %s54, [#allocation9]
    $region17: #{tpu_custom_call.1} parent=1 // pred_fallthru
      _
    // Predicated region
    $region18: #{tpu_custom_call.1} parent=1 // pred_check
      _
    $region19: #{tpu_custom_call.1} parent=1 // pred_check_branch
      %58 = sbr.rel (0) target = $region21
    $region20: #{tpu_custom_call.1} parent=1 // pred_region
      %60 = dma.done [#allocation3], 256
    $region21: #{tpu_custom_call.1} parent=1 // pred_fallthru
      _
    // Predicated region
    $region22: #{tpu_custom_call.1} parent=1 // pred_check
      _
    $region23: #{tpu_custom_call.1} parent=1 // pred_check_branch
      %62 = sbr.rel (0) target = $region25
    $region24: #{tpu_custom_call.1} parent=1 // pred_region
      %64 = dma.done [#allocation6], 64
    $region25: #{tpu_custom_call.1} parent=1 // pred_fallthru
      _
    // Predicated region
    $region26: #{tpu_custom_call.1} parent=1 // pred_check
      _
    $region27: #{tpu_custom_call.1} parent=1 // pred_check_branch
      %66 = sbr.rel (0) target = $region29
    $region28: #{tpu_custom_call.1} parent=1 // pred_region
      %68 = dma.done [#allocation6], 64
    $region29: #{tpu_custom_call.1} parent=1 // pred_fallthru
      _
    // Predicated region
    $region30: #{tpu_custom_call.1} parent=1 // pred_check
      _
    $region31: #{tpu_custom_call.1} parent=1 // pred_check_branch
      %70 = sbr.rel (0) target = $region33
    $region32: #{tpu_custom_call.1} parent=1 // pred_region
      %72 = dma.done [#allocation9], 64
    $region33: #{tpu_custom_call.1} parent=1 // pred_fallthru
      _
    %v73 = vld [vmem:[#allocation2] sm:$0xff]
    %v74 = vld [vmem:[#allocation2 + $0x8] sm:$0xff]
    %v75 = vlaneseq
    %v76 = vand.u32 %v75, 127
    %v77 = vadd.s32 %v76, 128
    %v78 = vadd.s32 %v76, 256
    %v79 = vadd.s32 %v76, 384
    %v80 = vand.u32 %v76, 255
    %v81 = vand.u32 %v77, 255
    %v82 = vand.u32 %v78, 255
    %v83 = vand.u32 %v79, 255
    %v84 = vand.u32 %v80, 15
    %v85 = vand.u32 %v81, 15
    %v86 = vand.u32 %v82, 15
    %v87 = vand.u32 %v83, 15
    %v88 = vshra.s32 %v80, 4
    %v89 = vshra.s32 %v81, 4
    %v90 = vshra.s32 %v82, 4
    %v91 = vshra.s32 %v83, 4
    %vm92 = vcmp.ge.s32.totalorder %v88, 1
    %vm93 = vcmp.ge.s32.totalorder %v89, 1
    %vm94 = vcmp.ge.s32.totalorder %v90, 1
    %vm95 = vcmp.ge.s32.totalorder %v91, 1
    %vm96 = vcmp.ge.s32.totalorder %v84, 1
    %vm97 = vcmp.ge.s32.totalorder %v85, 1
    %vm98 = vcmp.ge.s32.totalorder %v86, 1
    %vm99 = vcmp.ge.s32.totalorder %v87, 1
    %vm100 = vmand %vm92, %vm96
    %vm101 = vmand %vm93, %vm97
    %vm102 = vmand %vm94, %vm98
    %vm103 = vmand %vm95, %vm99
    %vm104 = vcmp.lt.s32.totalorder %v84, 15
    %vm105 = vcmp.lt.s32.totalorder %v85, 15
    %vm106 = vcmp.lt.s32.totalorder %v86, 15
    %vm107 = vcmp.lt.s32.totalorder %v87, 15
    %vm108 = vmand %vm92, %vm104
    %vm109 = vmand %vm93, %vm105
    %vm110 = vmand %vm94, %vm106
    %vm111 = vmand %vm95, %vm107
    %vm112 = vcmp.lt.s32.totalorder %v88, 15
    %vm113 = vcmp.lt.s32.totalorder %v89, 15
    %vm114 = vcmp.lt.s32.totalorder %v90, 15
    %vm115 = vcmp.lt.s32.totalorder %v91, 15
    %vm116 = vmand %vm112, %vm96
    %vm117 = vmand %vm113, %vm97
    %vm118 = vmand %vm114, %vm98
    %vm119 = vmand %vm115, %vm99
    %vm120 = vmand %vm112, %vm104
    %vm121 = vmand %vm113, %vm105
    %vm122 = vmand %vm114, %vm106
    %vm123 = vmand %vm115, %vm107
    %v124 = vld [vmem:[#allocation8] sm:$0xf]
    %127 = vst [vmem:[#allocation1] ss:$2 sm:$0xff] %v73
    %s128 = scalar_lea.vmem [#allocation1], 16
    %129 = vst [vmem:[%s128] ss:$2 sm:$0xff] %v74
    %v130 = vld.sshfl [vmem:[#allocation1] sm:$0xff pattern:$0x75316420]
    %v131 = vld.sshfl [vmem:[#allocation1 + $0x8] sm:$0xff pattern:$0x75316420]
    %v132 = vld.sshfl [vmem:[#allocation1 + $0x10] sm:$0xff pattern:$0x75316420]
    %v133 = vld.sshfl [vmem:[#allocation1 + $0x18] sm:$0xff pattern:$0x75316420]
    %138 = vrot.lane.b32.xlu0 %v130, 17
    %v139 = vpop.permute.xlu0 %138
    %140 = vrot.lane.b32.xlu0 %v131, 17
    %v141 = vpop.permute.xlu0 %140
    %142 = vrot.lane.b32.xlu0 %v132, 17
    %v143 = vpop.permute.xlu0 %142
    %144 = vrot.lane.b32.xlu0 %v133, 17
    %v145 = vpop.permute.xlu0 %144
    %vm146 = vcmp.lt.s32.totalorder %v76, 17
    %v147 = vsel %vm146, %v143, %v145
    %v148 = vsel %vm146, %v141, %v143
    %v149 = vsel %vm146, %v139, %v141
    %v150 = vsel %vm146, %v145, %v139
    %v151 = vsel %vm100, 1, 0
    %v152 = vsel %vm101, 1, 0
    %v153 = vsel %vm102, 1, 0
    %v154 = vsel %vm103, 1, 0
    %vm155 = vcmp.eq.s32.totalorder %v151, 1
    %vm156 = vcmp.eq.s32.totalorder %v152, 1
    %vm157 = vcmp.eq.s32.totalorder %v153, 1
    %vm158 = vcmp.eq.s32.totalorder %v154, 1
    %v159 = vsel %vm155, %v150, 0.0
    %v160 = vsel %vm156, %v149, 0.0
    %v161 = vsel %vm157, %v148, 0.0
    %v162 = vsel %vm158, %v147, 0.0
    %163 = vst [vmem:[#allocation1] ss:$2 sm:$0xff] %v73
    %s164 = scalar_lea.vmem [#allocation1], 16
    %165 = vst [vmem:[%s164] ss:$2 sm:$0xff] %v74
    %v166 = vld.sshfl [vmem:[#allocation1] sm:$0xff pattern:$0x75316420]
    %v167 = vld.sshfl [vmem:[#allocation1 + $0x8] sm:$0xff pattern:$0x75316420]
    %v168 = vld.sshfl [vmem:[#allocation1 + $0x10] sm:$0xff pattern:$0x75316420]
    %v169 = vld.sshfl [vmem:[#allocation1 + $0x18] sm:$0xff pattern:$0x75316420]
    %174 = vrot.lane.b32.xlu0 %v166, 16
    %v175 = vpop.permute.xlu0 %174
    %176 = vrot.lane.b32.xlu0 %v167, 16
    %v177 = vpop.permute.xlu0 %176
    %178 = vrot.lane.b32.xlu0 %v168, 16
    %v179 = vpop.permute.xlu0 %178
    %180 = vrot.lane.b32.xlu0 %v169, 16
    %v181 = vpop.permute.xlu0 %180
    %vm182 = vcmp.lt.s32.totalorder %v76, 16
    %v183 = vsel %vm182, %v179, %v181
    %v184 = vsel %vm182, %v177, %v179
    %v185 = vsel %vm182, %v175, %v177
    %v186 = vsel %vm182, %v181, %v175
    %v187 = vsel %vm92, 1, 0
    %v188 = vsel %vm93, 1, 0
    %v189 = vsel %vm94, 1, 0
    %v190 = vsel %vm95, 1, 0
    %vm191 = vcmp.eq.s32.totalorder %v187, 1
    %vm192 = vcmp.eq.s32.totalorder %v188, 1
    %vm193 = vcmp.eq.s32.totalorder %v189, 1
    %vm194 = vcmp.eq.s32.totalorder %v190, 1
    %v195 = vsel %vm191, %v186, 0.0
    %v196 = vsel %vm192, %v185, 0.0
    %v197 = vsel %vm193, %v184, 0.0
    %v198 = vsel %vm194, %v183, 0.0
    %199 = vst [vmem:[#allocation1] ss:$2 sm:$0xff] %v73
    %s200 = scalar_lea.vmem [#allocation1], 16
    %201 = vst [vmem:[%s200] ss:$2 sm:$0xff] %v74
    %v202 = vld.sshfl [vmem:[#allocation1] sm:$0xff pattern:$0x75316420]
    %v203 = vld.sshfl [vmem:[#allocation1 + $0x8] sm:$0xff pattern:$0x75316420]
    %v204 = vld.sshfl [vmem:[#allocation1 + $0x10] sm:$0xff pattern:$0x75316420]
    %v205 = vld.sshfl [vmem:[#allocation1 + $0x18] sm:$0xff pattern:$0x75316420]
    %210 = vrot.lane.b32.xlu0 %v202, 15
    %v211 = vpop.permute.xlu0 %210
    %212 = vrot.lane.b32.xlu0 %v203, 15
    %v213 = vpop.permute.xlu0 %212
    %214 = vrot.lane.b32.xlu0 %v204, 15
    %v215 = vpop.permute.xlu0 %214
    %216 = vrot.lane.b32.xlu0 %v205, 15
    %v217 = vpop.permute.xlu0 %216
    %vm218 = vcmp.lt.s32.totalorder %v76, 15
    %v219 = vsel %vm218, %v215, %v217
    %v220 = vsel %vm218, %v213, %v215
    %v221 = vsel %vm218, %v211, %v213
    %v222 = vsel %vm218, %v217, %v211
    %v223 = vsel %vm108, 1, 0
    %v224 = vsel %vm109, 1, 0
    %v225 = vsel %vm110, 1, 0
    %v226 = vsel %vm111, 1, 0
    %vm227 = vcmp.eq.s32.totalorder %v223, 1
    %vm228 = vcmp.eq.s32.totalorder %v224, 1
    %vm229 = vcmp.eq.s32.totalorder %v225, 1
    %vm230 = vcmp.eq.s32.totalorder %v226, 1
    %v231 = vsel %vm227, %v222, 0.0
    %v232 = vsel %vm228, %v221, 0.0
    %v233 = vsel %vm229, %v220, 0.0
    %v234 = vsel %vm230, %v219, 0.0
    %235 = vst [vmem:[#allocation1] ss:$2 sm:$0xff] %v73
    %s236 = scalar_lea.vmem [#allocation1], 16
    %237 = vst [vmem:[%s236] ss:$2 sm:$0xff] %v74
    %v238 = vld.sshfl [vmem:[#allocation1] sm:$0xff pattern:$0x75316420]
    %v239 = vld.sshfl [vmem:[#allocation1 + $0x8] sm:$0xff pattern:$0x75316420]
    %v240 = vld.sshfl [vmem:[#allocation1 + $0x10] sm:$0xff pattern:$0x75316420]
    %v241 = vld.sshfl [vmem:[#allocation1 + $0x18] sm:$0xff pattern:$0x75316420]
    %246 = vrot.lane.b32.xlu0 %v238, 1
    %v247 = vpop.permute.xlu0 %246
    %248 = vrot.lane.b32.xlu0 %v239, 1
    %v249 = vpop.permute.xlu0 %248
    %250 = vrot.lane.b32.xlu0 %v240, 1
    %v251 = vpop.permute.xlu0 %250
    %252 = vrot.lane.b32.xlu0 %v241, 1
    %v253 = vpop.permute.xlu0 %252
    %vm254 = vcmp.lt.s32.totalorder %v76, 1
    %v255 = vsel %vm254, %v251, %v253
    %v256 = vsel %vm254, %v249, %v251
    %v257 = vsel %vm254, %v247, %v249
    %v258 = vsel %vm254, %v253, %v247
    %v259 = vsel %vm96, 1, 0
    %v260 = vsel %vm97, 1, 0
    %v261 = vsel %vm98, 1, 0
    %v262 = vsel %vm99, 1, 0
    %vm263 = vcmp.eq.s32.totalorder %v259, 1
    %vm264 = vcmp.eq.s32.totalorder %v260, 1
    %vm265 = vcmp.eq.s32.totalorder %v261, 1
    %vm266 = vcmp.eq.s32.totalorder %v262, 1
    %v267 = vsel %vm263, %v258, 0.0
    %v268 = vsel %vm264, %v257, 0.0
    %v269 = vsel %vm265, %v256, 0.0
    %v270 = vsel %vm266, %v255, 0.0
    %271 = vst [vmem:[#allocation1] ss:$2 sm:$0xff] %v73
    %s272 = scalar_lea.vmem [#allocation1], 16
    %273 = vst [vmem:[%s272] ss:$2 sm:$0xff] %v74
    %v274 = vld.sshfl [vmem:[#allocation1] sm:$0xff pattern:$0x75316420]
    %v275 = vld.sshfl [vmem:[#allocation1 + $0x8] sm:$0xff pattern:$0x75316420]
    %v276 = vld.sshfl [vmem:[#allocation1 + $0x10] sm:$0xff pattern:$0x75316420]
    %v277 = vld.sshfl [vmem:[#allocation1 + $0x18] sm:$0xff pattern:$0x75316420]
    %282 = vrot.lane.b32.xlu0 %v274, 127
    %v283 = vpop.permute.xlu0 %282
    %284 = vrot.lane.b32.xlu0 %v275, 127
    %v285 = vpop.permute.xlu0 %284
    %286 = vrot.lane.b32.xlu0 %v276, 127
    %v287 = vpop.permute.xlu0 %286
    %288 = vrot.lane.b32.xlu0 %v277, 127
    %v289 = vpop.permute.xlu0 %288
    %vm290 = vcmp.lt.s32.totalorder %v76, 127
    %v291 = vsel %vm290, %v287, %v289
    %v292 = vsel %vm290, %v285, %v287
    %v293 = vsel %vm290, %v283, %v285
    %v294 = vsel %vm290, %v289, %v283
    %v295 = vsel %vm104, 1, 0
    %v296 = vsel %vm105, 1, 0
    %v297 = vsel %vm106, 1, 0
    %v298 = vsel %vm107, 1, 0
    %vm299 = vcmp.eq.s32.totalorder %v295, 1
    %vm300 = vcmp.eq.s32.totalorder %v296, 1
    %vm301 = vcmp.eq.s32.totalorder %v297, 1
    %vm302 = vcmp.eq.s32.totalorder %v298, 1
    %v303 = vsel %vm299, %v293, 0.0
    %v304 = vsel %vm300, %v292, 0.0
    %v305 = vsel %vm301, %v291, 0.0
    %v306 = vsel %vm302, %v294, 0.0
    %307 = vst [vmem:[#allocation1] ss:$2 sm:$0xff] %v73
    %s308 = scalar_lea.vmem [#allocation1], 16
    %309 = vst [vmem:[%s308] ss:$2 sm:$0xff] %v74
    %v310 = vld.sshfl [vmem:[#allocation1] sm:$0xff pattern:$0x75316420]
    %v311 = vld.sshfl [vmem:[#allocation1 + $0x8] sm:$0xff pattern:$0x75316420]
    %v312 = vld.sshfl [vmem:[#allocation1 + $0x10] sm:$0xff pattern:$0x75316420]
    %v313 = vld.sshfl [vmem:[#allocation1 + $0x18] sm:$0xff pattern:$0x75316420]
    %318 = vrot.lane.b32.xlu0 %v310, 113
    %v319 = vpop.permute.xlu0 %318
    %320 = vrot.lane.b32.xlu0 %v311, 113
    %v321 = vpop.permute.xlu0 %320
    %322 = vrot.lane.b32.xlu0 %v312, 113
    %v323 = vpop.permute.xlu0 %322
    %324 = vrot.lane.b32.xlu0 %v313, 113
    %v325 = vpop.permute.xlu0 %324
    %vm326 = vcmp.lt.s32.totalorder %v76, 113
    %v327 = vsel %vm326, %v323, %v325
    %v328 = vsel %vm326, %v321, %v323
    %v329 = vsel %vm326, %v319, %v321
    %v330 = vsel %vm326, %v325, %v319
    %v331 = vsel %vm116, 1, 0
    %v332 = vsel %vm117, 1, 0
    %v333 = vsel %vm118, 1, 0
    %v334 = vsel %vm119, 1, 0
    %vm335 = vcmp.eq.s32.totalorder %v331, 1
    %vm336 = vcmp.eq.s32.totalorder %v332, 1
    %vm337 = vcmp.eq.s32.totalorder %v333, 1
    %vm338 = vcmp.eq.s32.totalorder %v334, 1
    %v339 = vsel %vm335, %v329, 0.0
    %v340 = vsel %vm336, %v328, 0.0
    %v341 = vsel %vm337, %v327, 0.0
    %v342 = vsel %vm338, %v330, 0.0
    %343 = vst [vmem:[#allocation1] ss:$2 sm:$0xff] %v73
    %s344 = scalar_lea.vmem [#allocation1], 16
    %345 = vst [vmem:[%s344] ss:$2 sm:$0xff] %v74
    %v346 = vld.sshfl [vmem:[#allocation1] sm:$0xff pattern:$0x75316420]
    %v347 = vld.sshfl [vmem:[#allocation1 + $0x8] sm:$0xff pattern:$0x75316420]
    %v348 = vld.sshfl [vmem:[#allocation1 + $0x10] sm:$0xff pattern:$0x75316420]
    %v349 = vld.sshfl [vmem:[#allocation1 + $0x18] sm:$0xff pattern:$0x75316420]
    %354 = vrot.lane.b32.xlu0 %v346, 112
    %v355 = vpop.permute.xlu0 %354
    %356 = vrot.lane.b32.xlu0 %v347, 112
    %v357 = vpop.permute.xlu0 %356
    %358 = vrot.lane.b32.xlu0 %v348, 112
    %v359 = vpop.permute.xlu0 %358
    %360 = vrot.lane.b32.xlu0 %v349, 112
    %v361 = vpop.permute.xlu0 %360
    %vm362 = vcmp.lt.s32.totalorder %v76, 112
    %v363 = vsel %vm362, %v359, %v361
    %v364 = vsel %vm362, %v357, %v359
    %v365 = vsel %vm362, %v355, %v357
    %v366 = vsel %vm362, %v361, %v355
    %v367 = vsel %vm112, 1, 0
    %v368 = vsel %vm113, 1, 0
    %v369 = vsel %vm114, 1, 0
    %v370 = vsel %vm115, 1, 0
    %vm371 = vcmp.eq.s32.totalorder %v367, 1
    %vm372 = vcmp.eq.s32.totalorder %v368, 1
    %vm373 = vcmp.eq.s32.totalorder %v369, 1
    %vm374 = vcmp.eq.s32.totalorder %v370, 1
    %v375 = vsel %vm371, %v365, 0.0
    %v376 = vsel %vm372, %v364, 0.0
    %v377 = vsel %vm373, %v363, 0.0
    %v378 = vsel %vm374, %v366, 0.0
    %379 = vst [vmem:[#allocation1] ss:$2 sm:$0xff] %v73
    %s380 = scalar_lea.vmem [#allocation1], 16
    %381 = vst [vmem:[%s380] ss:$2 sm:$0xff] %v74
    %v382 = vld.sshfl [vmem:[#allocation1] sm:$0xff pattern:$0x75316420]
    %v383 = vld.sshfl [vmem:[#allocation1 + $0x8] sm:$0xff pattern:$0x75316420]
    %v384 = vld.sshfl [vmem:[#allocation1 + $0x10] sm:$0xff pattern:$0x75316420]
    %v385 = vld.sshfl [vmem:[#allocation1 + $0x18] sm:$0xff pattern:$0x75316420]
    %390 = vrot.lane.b32.xlu0 %v382, 111
    %v391 = vpop.permute.xlu0 %390
    %392 = vrot.lane.b32.xlu0 %v383, 111
    %v393 = vpop.permute.xlu0 %392
    %394 = vrot.lane.b32.xlu0 %v384, 111
    %v395 = vpop.permute.xlu0 %394
    %396 = vrot.lane.b32.xlu0 %v385, 111
    %v397 = vpop.permute.xlu0 %396
    %vm398 = vcmp.lt.s32.totalorder %v76, 111
    %v399 = vsel %vm398, %v395, %v397
    %v400 = vsel %vm398, %v393, %v395
    %v401 = vsel %vm398, %v391, %v393
    %v402 = vsel %vm398, %v397, %v391
    %v403 = vsel %vm120, 1, 0
    %v404 = vsel %vm121, 1, 0
    %v405 = vsel %vm122, 1, 0
    %v406 = vsel %vm123, 1, 0
    %vm407 = vcmp.eq.s32.totalorder %v403, 1
    %vm408 = vcmp.eq.s32.totalorder %v404, 1
    %vm409 = vcmp.eq.s32.totalorder %v405, 1
    %vm410 = vcmp.eq.s32.totalorder %v406, 1
    %v411 = vsel %vm407, %v401, 0.0
    %v412 = vsel %vm408, %v400, 0.0
    %v413 = vsel %vm409, %v399, 0.0
    %v414 = vsel %vm410, %v402, 0.0
    %v419 = vrot.slane %v195, 4
    %v420 = vrot.slane %v196, 4
    %v421 = vrot.slane %v197, 4
    %v422 = vrot.slane %v198, 4
    %v431 = vrot.slane %v267, 4
    %v432 = vrot.slane %v268, 4
    %v433 = vrot.slane %v269, 4
    %v434 = vrot.slane %v270, 4
    %439 = vst [vmem:[#allocation1] ss:$2 sm:$0xff] %v73
    %s440 = scalar_lea.vmem [#allocation1], 16
    %441 = vst [vmem:[%s440] ss:$2 sm:$0xff] %v74
    %v442 = vld.sshfl [vmem:[#allocation1] sm:$0xff pattern:$0x75316420]
    %v443 = vld.sshfl [vmem:[#allocation1 + $0x8] sm:$0xff pattern:$0x75316420]
    %v444 = vld.sshfl [vmem:[#allocation1 + $0x10] sm:$0xff pattern:$0x75316420]
    %v445 = vld.sshfl [vmem:[#allocation1 + $0x18] sm:$0xff pattern:$0x75316420]
    %v454 = vrot.slane %v303, 4
    %v455 = vrot.slane %v304, 4
    %v456 = vrot.slane %v305, 4
    %v457 = vrot.slane %v306, 4
    %v466 = vrot.slane %v375, 4
    %v467 = vrot.slane %v376, 4
    %v468 = vrot.slane %v377, 4
    %v469 = vrot.slane %v378, 4
    %vm474 = vcmask 1043456
    %v475 = vsel %vm474, %v159, %v419
    %v476 = vsel %vm474, %v160, %v420
    %v477 = vsel %vm474, %v161, %v421
    %v478 = vsel %vm474, %v162, %v422
    %v479 = vsel %vm474, %v231, %v431
    %v480 = vsel %vm474, %v232, %v432
    %v481 = vsel %vm474, %v233, %v433
    %v482 = vsel %vm474, %v234, %v434
    %v483 = vsel %vm474, %v442, %v454
    %v484 = vsel %vm474, %v443, %v455
    %v485 = vsel %vm474, %v444, %v456
    %v486 = vsel %vm474, %v445, %v457
    %v487 = vsel %vm474, %v339, %v466
    %v488 = vsel %vm474, %v340, %v467
    %v489 = vsel %vm474, %v341, %v468
    %v490 = vsel %vm474, %v342, %v469
    %v491 = vld [vmem:[#allocation5] sm:$0xf]
    %vm492 = vcmask 293888
    %v494 = vsel %vm492, %v491, 0
    %v497 = vsel %vm474, %v411, 0
    %v500 = vsel %vm474, %v412, 0
    %v503 = vsel %vm474, %v413, 0
    %v506 = vsel %vm474, %v414, 0
    %508 = vmatpush.msra.mxu0 0.0
    %509 = vmatpush.msra.mxu0 0.0
    %510 = vmatpush.msra.mxu0 0.0
    %511 = vmatpush.msra.mxu0 0.0
    %512 = vmatpush.msra.mxu0 0.0
    %513 = vmatpush.msra.mxu0 0.0
    %514 = vmatpush.msra.mxu0 0.0
    %515 = vmatpush.msra.mxu0 0.0
    %516 = vmatpush.msra.mxu0 0.0
    %517 = vmatpush.msra.mxu0 0.0
    %518 = vmatpush.msra.mxu0 0.0
    %519 = vmatpush.msra.mxu0 %v497
    %520 = vmatpush.msra.mxu0 %v487
    %521 = vmatpush.msra.mxu0 %v483
    %522 = vmatpush.msra.mxu0 %v479
    %523 = vmatpush.msra.mxu0 %v475
    %524 = vmatmul.f32.gmra.mxu0 %v494
    %v525 = vpop.f32.mrf.mxu0
    %v526 = vadd.f32 0.0, %v525
    %527 = vdwg.mxu0
    %528 = vmatpush.msra.mxu0 0.0
    %529 = vmatpush.msra.mxu0 0.0
    %530 = vmatpush.msra.mxu0 0.0
    %531 = vmatpush.msra.mxu0 0.0
    %532 = vmatpush.msra.mxu0 0.0
    %533 = vmatpush.msra.mxu0 0.0
    %534 = vmatpush.msra.mxu0 0.0
    %535 = vmatpush.msra.mxu0 0.0
    %536 = vmatpush.msra.mxu0 0.0
    %537 = vmatpush.msra.mxu0 0.0
    %538 = vmatpush.msra.mxu0 0.0
    %539 = vmatpush.msra.mxu0 %v500
    %540 = vmatpush.msra.mxu0 %v488
    %541 = vmatpush.msra.mxu0 %v484
    %542 = vmatpush.msra.mxu0 %v480
    %543 = vmatpush.msra.mxu0 %v476
    %544 = vmatmul.f32.gmra.mxu0 %v494
    %v545 = vpop.f32.mrf.mxu0
    %v546 = vadd.f32 0.0, %v545
    %547 = vdwg.mxu0
    %548 = vmatpush.msra.mxu0 0.0
    %549 = vmatpush.msra.mxu0 0.0
    %550 = vmatpush.msra.mxu0 0.0
    %551 = vmatpush.msra.mxu0 0.0
    %552 = vmatpush.msra.mxu0 0.0
    %553 = vmatpush.msra.mxu0 0.0
    %554 = vmatpush.msra.mxu0 0.0
    %555 = vmatpush.msra.mxu0 0.0
    %556 = vmatpush.msra.mxu0 0.0
    %557 = vmatpush.msra.mxu0 0.0
    %558 = vmatpush.msra.mxu0 0.0
    %559 = vmatpush.msra.mxu0 %v503
    %560 = vmatpush.msra.mxu0 %v489
    %561 = vmatpush.msra.mxu0 %v485
    %562 = vmatpush.msra.mxu0 %v481
    %563 = vmatpush.msra.mxu0 %v477
    %564 = vmatmul.f32.gmra.mxu0 %v494
    %v565 = vpop.f32.mrf.mxu0
    %v566 = vadd.f32 0.0, %v565
    %567 = vdwg.mxu0
    %568 = vmatpush.msra.mxu0 0.0
    %569 = vmatpush.msra.mxu0 0.0
    %570 = vmatpush.msra.mxu0 0.0
    %571 = vmatpush.msra.mxu0 0.0
    %572 = vmatpush.msra.mxu0 0.0
    %573 = vmatpush.msra.mxu0 0.0
    %574 = vmatpush.msra.mxu0 0.0
    %575 = vmatpush.msra.mxu0 0.0
    %576 = vmatpush.msra.mxu0 0.0
    %577 = vmatpush.msra.mxu0 0.0
    %578 = vmatpush.msra.mxu0 0.0
    %579 = vmatpush.msra.mxu0 %v506
    %580 = vmatpush.msra.mxu0 %v490
    %581 = vmatpush.msra.mxu0 %v486
    %582 = vmatpush.msra.mxu0 %v482
    %583 = vmatpush.msra.mxu0 %v478
    %584 = vmatmul.f32.gmra.mxu0 %v494
    %v585 = vpop.f32.mrf.mxu0
    %v586 = vadd.f32 0.0, %v585
    %587 = vdwg.mxu0
    %v588 = vsel %vm474, %v526, 0.0
    %v589 = vsel %vm474, %v546, 0.0
    %v590 = vadd.f32 %v588, %v589
    %v591 = vsel %vm474, %v566, 0.0
    %v592 = vadd.f32 %v590, %v591
    %v593 = vsel %vm474, %v586, 0.0
    %v594 = vadd.f32 %v592, %v593
    %595 = vadd.xlane.f32.xlu0 %v594
    %v596 = vpop.xlane.xlu0 %595
    %v597 = vmul.f32 %v596, 0.001953125
    %v598 = vsub.f32 %v526, %v597
    %v599 = vsub.f32 %v546, %v597
    %v600 = vsub.f32 %v566, %v597
    %v601 = vsub.f32 %v586, %v597
    %v602 = vmul.f32 %v598, %v598
    %v603 = vmul.f32 %v599, %v599
    %v604 = vmul.f32 %v600, %v600
    %v605 = vmul.f32 %v601, %v601
    %v606 = vsel %vm474, %v602, 0.0
    %v607 = vsel %vm474, %v603, 0.0
    %v608 = vadd.f32 %v606, %v607
    %v609 = vsel %vm474, %v604, 0.0
    %v610 = vadd.f32 %v608, %v609
    %v611 = vsel %vm474, %v605, 0.0
    %v612 = vadd.f32 %v610, %v611
    %613 = vadd.xlane.f32.xlu0 %v612
    %v614 = vpop.xlane.xlu0 %613
    %v615 = vmul.f32 %v614, 0.001953125
    %v616 = vadd.f32 %v615, 1e-05
    %v617 = vrsqrt.pop %v616
    %v618 = vmul.f32 %v617, %v616
    %v619 = vmul.f32 %v618, %v617
    %v620 = vmul.f32 0.5, %v619
    %v621 = vsub.f32 1.5, %v620
    %v622 = vmul.f32 %v617, %v621
    %vm623 = vweird.f32 %v616
    %vm624 = vweird.f32 %v617
    %vm625 = vmor %vm623, %vm624
    %v626 = vsel %vm625, %v617, %v622
    %v627 = vmul.f32 %v124, %v626
    %629 = vset.pattern.permute.xlu0 0
    %630 = vperm.xlu0 %629, %v627
    %v631 = vpop.permute.xlu0 %630
    %v633 = vmul.f32 %v598, %v631
    %v634 = vmul.f32 %v599, %v631
    %v635 = vmul.f32 %v600, %v631
    %v636 = vmul.f32 %v601, %v631
    %638 = vset.pattern.permute.xlu0 1
    %639 = vperm.xlu0 %638, %v124
    %v640 = vpop.permute.xlu0 %639
    %v642 = vadd.f32 %v633, %v640
    %v643 = vadd.f32 %v634, %v640
    %v644 = vadd.f32 %v635, %v640
    %v645 = vadd.f32 %v636, %v640
    %v646 = vmul.f32 %v642, 0.5
    %v647 = vmul.f32 %v643, 0.5
    %v648 = vmul.f32 %v644, 0.5
    %v649 = vmul.f32 %v645, 0.5
    %v650 = vmul.f32 %v642, 0.70710677
    %v651 = vmul.f32 %v643, 0.70710677
    %v652 = vmul.f32 %v644, 0.70710677
    %v653 = vmul.f32 %v645, 0.70710677
    %v654 = vmul.f32 %v650, %v650
    %v655 = vmin.f32 16.0, %v654
    %v656 = vmul.f32 %v655, 2.1237322e-06
    %v657 = vadd.f32 %v656, 0.00028619796
    %v658 = vmul.f32 %v655, %v657
    %v659 = vadd.f32 %v658, 0.0036580483
    %v660 = vmul.f32 %v655, %v659
    %v661 = vadd.f32 %v660, 0.05243302
    %v662 = vmul.f32 %v655, %v661
    %v663 = vadd.f32 %v662, 0.18741608
    %v664 = vmul.f32 %v655, %v663
    %v665 = vadd.f32 %v664, 1.1283791
    %v666 = vmul.f32 %v650, %v665
    %v667 = vmul.f32 %v655, 3.8918573e-05
    %v668 = vadd.f32 %v667, 0.001143296
    %v669 = vmul.f32 %v655, %v668
    %v670 = vadd.f32 %v669, 0.014752088
    %v671 = vmul.f32 %v655, %v670
    %v672 = vadd.f32 %v671, 0.112945676
    %v673 = vmul.f32 %v655, %v672
    %v674 = vadd.f32 %v673, 0.4994258
    %v675 = vmul.f32 %v655, %v674
    %v676 = vadd.f32 %v675, 1.0
    %v677 = vrcp.pop %v676
    %v678 = vmul.f32 %v676, %v677
    %v679 = vsub.f32 1.0, %v678
    %v680 = vmul.f32 %v677, %v679
    %v681 = vadd.f32 %v677, %v680
    %vm682 = vweird.f32 %v676
    %vm683 = vweird.f32 %v677
    %vm684 = vmor %vm682, %vm683
    %v685 = vsel %vm684, %v677, %v681
    %v686 = vand.u32 2147483647, %v676
    %vm687 = vcmp.eq.f32.partialorder %v686, 8.507059e+37
    %v688 = vand.u32 %v676, 2147483648
    %v689 = vor.u32 1.1754944e-38, %v688
    %v690 = vsel %vm687, %v689, %v685
    %v691 = vmul.f32 %v666, %v690
    %v692 = vmin.f32 %v691, 1.0
    %v693 = vmax.f32 %v692, -1.0
    %v694 = vmul.f32 %v651, %v651
    %v695 = vmin.f32 16.0, %v694
    %v696 = vmul.f32 %v695, 2.1237322e-06
    %v697 = vadd.f32 %v696, 0.00028619796
    %v698 = vmul.f32 %v695, %v697
    %v699 = vadd.f32 %v698, 0.0036580483
    %v700 = vmul.f32 %v695, %v699
    %v701 = vadd.f32 %v700, 0.05243302
    %v702 = vmul.f32 %v695, %v701
    %v703 = vadd.f32 %v702, 0.18741608
    %v704 = vmul.f32 %v695, %v703
    %v705 = vadd.f32 %v704, 1.1283791
    %v706 = vmul.f32 %v651, %v705
    %v707 = vmul.f32 %v695, 3.8918573e-05
    %v708 = vadd.f32 %v707, 0.001143296
    %v709 = vmul.f32 %v695, %v708
    %v710 = vadd.f32 %v709, 0.014752088
    %v711 = vmul.f32 %v695, %v710
    %v712 = vadd.f32 %v711, 0.112945676
    %v713 = vmul.f32 %v695, %v712
    %v714 = vadd.f32 %v713, 0.4994258
    %v715 = vmul.f32 %v695, %v714
    %v716 = vadd.f32 %v715, 1.0
    %v717 = vrcp.pop %v716
    %v718 = vmul.f32 %v716, %v717
    %v719 = vsub.f32 1.0, %v718
    %v720 = vmul.f32 %v717, %v719
    %v721 = vadd.f32 %v717, %v720
    %vm722 = vweird.f32 %v716
    %vm723 = vweird.f32 %v717
    %vm724 = vmor %vm722, %vm723
    %v725 = vsel %vm724, %v717, %v721
    %v726 = vand.u32 2147483647, %v716
    %vm727 = vcmp.eq.f32.partialorder %v726, 8.507059e+37
    %v728 = vand.u32 %v716, 2147483648
    %v729 = vor.u32 1.1754944e-38, %v728
    %v730 = vsel %vm727, %v729, %v725
    %v731 = vmul.f32 %v706, %v730
    %v732 = vmin.f32 %v731, 1.0
    %v733 = vmax.f32 %v732, -1.0
    %v734 = vmul.f32 %v652, %v652
    %v735 = vmin.f32 16.0, %v734
    %v736 = vmul.f32 %v735, 2.1237322e-06
    %v737 = vadd.f32 %v736, 0.00028619796
    %v738 = vmul.f32 %v735, %v737
    %v739 = vadd.f32 %v738, 0.0036580483
    %v740 = vmul.f32 %v735, %v739
    %v741 = vadd.f32 %v740, 0.05243302
    %v742 = vmul.f32 %v735, %v741
    %v743 = vadd.f32 %v742, 0.18741608
    %v744 = vmul.f32 %v735, %v743
    %v745 = vadd.f32 %v744, 1.1283791
    %v746 = vmul.f32 %v652, %v745
    %v747 = vmul.f32 %v735, 3.8918573e-05
    %v748 = vadd.f32 %v747, 0.001143296
    %v749 = vmul.f32 %v735, %v748
    %v750 = vadd.f32 %v749, 0.014752088
    %v751 = vmul.f32 %v735, %v750
    %v752 = vadd.f32 %v751, 0.112945676
    %v753 = vmul.f32 %v735, %v752
    %v754 = vadd.f32 %v753, 0.4994258
    %v755 = vmul.f32 %v735, %v754
    %v756 = vadd.f32 %v755, 1.0
    %v757 = vrcp.pop %v756
    %v758 = vmul.f32 %v756, %v757
    %v759 = vsub.f32 1.0, %v758
    %v760 = vmul.f32 %v757, %v759
    %v761 = vadd.f32 %v757, %v760
    %vm762 = vweird.f32 %v756
    %vm763 = vweird.f32 %v757
    %vm764 = vmor %vm762, %vm763
    %v765 = vsel %vm764, %v757, %v761
    %v766 = vand.u32 2147483647, %v756
    %vm767 = vcmp.eq.f32.partialorder %v766, 8.507059e+37
    %v768 = vand.u32 %v756, 2147483648
    %v769 = vor.u32 1.1754944e-38, %v768
    %v770 = vsel %vm767, %v769, %v765
    %v771 = vmul.f32 %v746, %v770
    %v772 = vmin.f32 %v771, 1.0
    %v773 = vmax.f32 %v772, -1.0
    %v774 = vmul.f32 %v653, %v653
    %v775 = vmin.f32 16.0, %v774
    %v776 = vmul.f32 %v775, 2.1237322e-06
    %v777 = vadd.f32 %v776, 0.00028619796
    %v778 = vmul.f32 %v775, %v777
    %v779 = vadd.f32 %v778, 0.0036580483
    %v780 = vmul.f32 %v775, %v779
    %v781 = vadd.f32 %v780, 0.05243302
    %v782 = vmul.f32 %v775, %v781
    %v783 = vadd.f32 %v782, 0.18741608
    %v784 = vmul.f32 %v775, %v783
    %v785 = vadd.f32 %v784, 1.1283791
    %v786 = vmul.f32 %v653, %v785
    %v787 = vmul.f32 %v775, 3.8918573e-05
    %v788 = vadd.f32 %v787, 0.001143296
    %v789 = vmul.f32 %v775, %v788
    %v790 = vadd.f32 %v789, 0.014752088
    %v791 = vmul.f32 %v775, %v790
    %v792 = vadd.f32 %v791, 0.112945676
    %v793 = vmul.f32 %v775, %v792
    %v794 = vadd.f32 %v793, 0.4994258
    %v795 = vmul.f32 %v775, %v794
    %v796 = vadd.f32 %v795, 1.0
    %v797 = vrcp.pop %v796
    %v798 = vmul.f32 %v796, %v797
    %v799 = vsub.f32 1.0, %v798
    %v800 = vmul.f32 %v797, %v799
    %v801 = vadd.f32 %v797, %v800
    %vm802 = vweird.f32 %v796
    %vm803 = vweird.f32 %v797
    %vm804 = vmor %vm802, %vm803
    %v805 = vsel %vm804, %v797, %v801
    %v806 = vand.u32 2147483647, %v796
    %vm807 = vcmp.eq.f32.partialorder %v806, 8.507059e+37
    %v808 = vand.u32 %v796, 2147483648
    %v809 = vor.u32 1.1754944e-38, %v808
    %v810 = vsel %vm807, %v809, %v805
    %v811 = vmul.f32 %v786, %v810
    %v812 = vmin.f32 %v811, 1.0
    %v813 = vmax.f32 %v812, -1.0
    %v814 = vadd.f32 %v693, 1.0
    %v815 = vadd.f32 %v733, 1.0
    %v816 = vadd.f32 %v773, 1.0
    %v817 = vadd.f32 %v813, 1.0
    %v818 = vmul.f32 %v646, %v814
    %v819 = vmul.f32 %v647, %v815
    %v820 = vmul.f32 %v648, %v816
    %v821 = vmul.f32 %v649, %v817
    %822 = vrot.lane.b32.xlu0 %v818, 17
    %v823 = vpop.permute.xlu0 %822
    %824 = vrot.lane.b32.xlu0 %v819, 17
    %v825 = vpop.permute.xlu0 %824
    %826 = vrot.lane.b32.xlu0 %v820, 17
    %v827 = vpop.permute.xlu0 %826
    %828 = vrot.lane.b32.xlu0 %v821, 17
    %v829 = vpop.permute.xlu0 %828
    %v830 = vsel %vm146, %v827, %v829
    %v831 = vsel %vm146, %v825, %v827
    %v832 = vsel %vm146, %v823, %v825
    %v833 = vsel %vm146, %v829, %v823
    %v834 = vsel %vm155, %v833, 0.0
    %v835 = vsel %vm156, %v832, 0.0
    %v836 = vsel %vm157, %v831, 0.0
    %v837 = vsel %vm158, %v830, 0.0
    %838 = vrot.lane.b32.xlu0 %v818, 16
    %v839 = vpop.permute.xlu0 %838
    %840 = vrot.lane.b32.xlu0 %v819, 16
    %v841 = vpop.permute.xlu0 %840
    %842 = vrot.lane.b32.xlu0 %v820, 16
    %v843 = vpop.permute.xlu0 %842
    %844 = vrot.lane.b32.xlu0 %v821, 16
    %v845 = vpop.permute.xlu0 %844
    %v846 = vsel %vm182, %v843, %v845
    %v847 = vsel %vm182, %v841, %v843
    %v848 = vsel %vm182, %v839, %v841
    %v849 = vsel %vm182, %v845, %v839
    %v850 = vsel %vm191, %v849, 0.0
    %v851 = vsel %vm192, %v848, 0.0
    %v852 = vsel %vm193, %v847, 0.0
    %v853 = vsel %vm194, %v846, 0.0
    %854 = vrot.lane.b32.xlu0 %v818, 15
    %v855 = vpop.permute.xlu0 %854
    %856 = vrot.lane.b32.xlu0 %v819, 15
    %v857 = vpop.permute.xlu0 %856
    %858 = vrot.lane.b32.xlu0 %v820, 15
    %v859 = vpop.permute.xlu0 %858
    %860 = vrot.lane.b32.xlu0 %v821, 15
    %v861 = vpop.permute.xlu0 %860
    %v862 = vsel %vm218, %v859, %v861
    %v863 = vsel %vm218, %v857, %v859
    %v864 = vsel %vm218, %v855, %v857
    %v865 = vsel %vm218, %v861, %v855
    %v866 = vsel %vm227, %v865, 0.0
    %v867 = vsel %vm228, %v864, 0.0
    %v868 = vsel %vm229, %v863, 0.0
    %v869 = vsel %vm230, %v862, 0.0
    %870 = vrot.lane.b32.xlu0 %v818, 1
    %v871 = vpop.permute.xlu0 %870
    %872 = vrot.lane.b32.xlu0 %v819, 1
    %v873 = vpop.permute.xlu0 %872
    %874 = vrot.lane.b32.xlu0 %v820, 1
    %v875 = vpop.permute.xlu0 %874
    %876 = vrot.lane.b32.xlu0 %v821, 1
    %v877 = vpop.permute.xlu0 %876
    %v878 = vsel %vm254, %v875, %v877
    %v879 = vsel %vm254, %v873, %v875
    %v880 = vsel %vm254, %v871, %v873
    %v881 = vsel %vm254, %v877, %v871
    %v882 = vsel %vm263, %v881, 0.0
    %v883 = vsel %vm264, %v880, 0.0
    %v884 = vsel %vm265, %v879, 0.0
    %v885 = vsel %vm266, %v878, 0.0
    %886 = vrot.lane.b32.xlu0 %v818, 127
    %v887 = vpop.permute.xlu0 %886
    %888 = vrot.lane.b32.xlu0 %v819, 127
    %v889 = vpop.permute.xlu0 %888
    %890 = vrot.lane.b32.xlu0 %v820, 127
    %v891 = vpop.permute.xlu0 %890
    %892 = vrot.lane.b32.xlu0 %v821, 127
    %v893 = vpop.permute.xlu0 %892
    %v894 = vsel %vm290, %v891, %v893
    %v895 = vsel %vm290, %v889, %v891
    %v896 = vsel %vm290, %v887, %v889
    %v897 = vsel %vm290, %v893, %v887
    %v898 = vsel %vm299, %v896, 0.0
    %v899 = vsel %vm300, %v895, 0.0
    %v900 = vsel %vm301, %v894, 0.0
    %v901 = vsel %vm302, %v897, 0.0
    %902 = vrot.lane.b32.xlu0 %v818, 113
    %v903 = vpop.permute.xlu0 %902
    %904 = vrot.lane.b32.xlu0 %v819, 113
    %v905 = vpop.permute.xlu0 %904
    %906 = vrot.lane.b32.xlu0 %v820, 113
    %v907 = vpop.permute.xlu0 %906
    %908 = vrot.lane.b32.xlu0 %v821, 113
    %v909 = vpop.permute.xlu0 %908
    %v910 = vsel %vm326, %v907, %v909
    %v911 = vsel %vm326, %v905, %v907
    %v912 = vsel %vm326, %v903, %v905
    %v913 = vsel %vm326, %v909, %v903
    %v914 = vsel %vm335, %v912, 0.0
    %v915 = vsel %vm336, %v911, 0.0
    %v916 = vsel %vm337, %v910, 0.0
    %v917 = vsel %vm338, %v913, 0.0
    %918 = vrot.lane.b32.xlu0 %v818, 112
    %v919 = vpop.permute.xlu0 %918
    %920 = vrot.lane.b32.xlu0 %v819, 112
    %v921 = vpop.permute.xlu0 %920
    %922 = vrot.lane.b32.xlu0 %v820, 112
    %v923 = vpop.permute.xlu0 %922
    %924 = vrot.lane.b32.xlu0 %v821, 112
    %v925 = vpop.permute.xlu0 %924
    %v926 = vsel %vm362, %v923, %v925
    %v927 = vsel %vm362, %v921, %v923
    %v928 = vsel %vm362, %v919, %v921
    %v929 = vsel %vm362, %v925, %v919
    %v930 = vsel %vm371, %v928, 0.0
    %v931 = vsel %vm372, %v927, 0.0
    %v932 = vsel %vm373, %v926, 0.0
    %v933 = vsel %vm374, %v929, 0.0
    %934 = vrot.lane.b32.xlu0 %v818, 111
    %v935 = vpop.permute.xlu0 %934
    %936 = vrot.lane.b32.xlu0 %v819, 111
    %v937 = vpop.permute.xlu0 %936
    %938 = vrot.lane.b32.xlu0 %v820, 111
    %v939 = vpop.permute.xlu0 %938
    %940 = vrot.lane.b32.xlu0 %v821, 111
    %v941 = vpop.permute.xlu0 %940
    %v942 = vsel %vm398, %v939, %v941
    %v943 = vsel %vm398, %v937, %v939
    %v944 = vsel %vm398, %v935, %v937
    %v945 = vsel %vm398, %v941, %v935
    %v946 = vsel %vm407, %v944, 0.0
    %v947 = vsel %vm408, %v943, 0.0
    %v948 = vsel %vm409, %v942, 0.0
    %v949 = vsel %vm410, %v945, 0.0
    %v954 = vrot.slane %v850, 4
    %v955 = vrot.slane %v851, 4
    %v956 = vrot.slane %v852, 4
    %v957 = vrot.slane %v853, 4
    %v966 = vrot.slane %v882, 4
    %v967 = vrot.slane %v883, 4
    %v968 = vrot.slane %v884, 4
    %v969 = vrot.slane %v885, 4
    %v978 = vrot.slane %v898, 4
    %v979 = vrot.slane %v899, 4
    %v980 = vrot.slane %v900, 4
    %v981 = vrot.slane %v901, 4
    %v990 = vrot.slane %v930, 4
    %v991 = vrot.slane %v931, 4
    %v992 = vrot.slane %v932, 4
    %v993 = vrot.slane %v933, 4
    %v998 = vsel %vm474, %v834, %v954
    %v999 = vsel %vm474, %v835, %v955
    %v1000 = vsel %vm474, %v836, %v956
    %v1001 = vsel %vm474, %v837, %v957
    %v1002 = vsel %vm474, %v866, %v966
    %v1003 = vsel %vm474, %v867, %v967
    %v1004 = vsel %vm474, %v868, %v968
    %v1005 = vsel %vm474, %v869, %v969
    %v1006 = vsel %vm474, %v818, %v978
    %v1007 = vsel %vm474, %v819, %v979
    %v1008 = vsel %vm474, %v820, %v980
    %v1009 = vsel %vm474, %v821, %v981
    %v1010 = vsel %vm474, %v914, %v990
    %v1011 = vsel %vm474, %v915, %v991
    %v1012 = vsel %vm474, %v916, %v992
    %v1013 = vsel %vm474, %v917, %v993
    %v1014 = vld [vmem:[#allocation7] sm:$0xf]
    %v1016 = vsel %vm492, %v1014, 0
    %v1019 = vsel %vm474, %v946, 0
    %v1022 = vsel %vm474, %v947, 0
    %v1025 = vsel %vm474, %v948, 0
    %v1028 = vsel %vm474, %v949, 0
    %1030 = vmatpush.msra.mxu0 0.0
    %1031 = vmatpush.msra.mxu0 0.0
    %1032 = vmatpush.msra.mxu0 0.0
    %1033 = vmatpush.msra.mxu0 0.0
    %1034 = vmatpush.msra.mxu0 0.0
    %1035 = vmatpush.msra.mxu0 0.0
    %1036 = vmatpush.msra.mxu0 0.0
    %1037 = vmatpush.msra.mxu0 0.0
    %1038 = vmatpush.msra.mxu0 0.0
    %1039 = vmatpush.msra.mxu0 0.0
    %1040 = vmatpush.msra.mxu0 0.0
    %1041 = vmatpush.msra.mxu0 %v1019
    %1042 = vmatpush.msra.mxu0 %v1010
    %1043 = vmatpush.msra.mxu0 %v1006
    %1044 = vmatpush.msra.mxu0 %v1002
    %1045 = vmatpush.msra.mxu0 %v998
    %1046 = vmatmul.f32.gmra.mxu0 %v1016
    %v1047 = vpop.f32.mrf.mxu0
    %v1048 = vadd.f32 0.0, %v1047
    %1049 = vdwg.mxu0
    %1050 = vmatpush.msra.mxu0 0.0
    %1051 = vmatpush.msra.mxu0 0.0
    %1052 = vmatpush.msra.mxu0 0.0
    %1053 = vmatpush.msra.mxu0 0.0
    %1054 = vmatpush.msra.mxu0 0.0
    %1055 = vmatpush.msra.mxu0 0.0
    %1056 = vmatpush.msra.mxu0 0.0
    %1057 = vmatpush.msra.mxu0 0.0
    %1058 = vmatpush.msra.mxu0 0.0
    %1059 = vmatpush.msra.mxu0 0.0
    %1060 = vmatpush.msra.mxu0 0.0
    %1061 = vmatpush.msra.mxu0 %v1022
    %1062 = vmatpush.msra.mxu0 %v1011
    %1063 = vmatpush.msra.mxu0 %v1007
    %1064 = vmatpush.msra.mxu0 %v1003
    %1065 = vmatpush.msra.mxu0 %v999
    %1066 = vmatmul.f32.gmra.mxu0 %v1016
    %v1067 = vpop.f32.mrf.mxu0
    %v1068 = vadd.f32 0.0, %v1067
    %1069 = vdwg.mxu0
    %1070 = vmatpush.msra.mxu0 0.0
    %1071 = vmatpush.msra.mxu0 0.0
    %1072 = vmatpush.msra.mxu0 0.0
    %1073 = vmatpush.msra.mxu0 0.0
    %1074 = vmatpush.msra.mxu0 0.0
    %1075 = vmatpush.msra.mxu0 0.0
    %1076 = vmatpush.msra.mxu0 0.0
    %1077 = vmatpush.msra.mxu0 0.0
    %1078 = vmatpush.msra.mxu0 0.0
    %1079 = vmatpush.msra.mxu0 0.0
    %1080 = vmatpush.msra.mxu0 0.0
    %1081 = vmatpush.msra.mxu0 %v1025
    %1082 = vmatpush.msra.mxu0 %v1012
    %1083 = vmatpush.msra.mxu0 %v1008
    %1084 = vmatpush.msra.mxu0 %v1004
    %1085 = vmatpush.msra.mxu0 %v1000
    %1086 = vmatmul.f32.gmra.mxu0 %v1016
    %v1087 = vpop.f32.mrf.mxu0
    %v1088 = vadd.f32 0.0, %v1087
    %1089 = vdwg.mxu0
    %1090 = vmatpush.msra.mxu0 0.0
    %1091 = vmatpush.msra.mxu0 0.0
    %1092 = vmatpush.msra.mxu0 0.0
    %1093 = vmatpush.msra.mxu0 0.0
    %1094 = vmatpush.msra.mxu0 0.0
    %1095 = vmatpush.msra.mxu0 0.0
    %1096 = vmatpush.msra.mxu0 0.0
    %1097 = vmatpush.msra.mxu0 0.0
    %1098 = vmatpush.msra.mxu0 0.0
    %1099 = vmatpush.msra.mxu0 0.0
    %1100 = vmatpush.msra.mxu0 0.0
    %1101 = vmatpush.msra.mxu0 %v1028
    %1102 = vmatpush.msra.mxu0 %v1013
    %1103 = vmatpush.msra.mxu0 %v1009
    %1104 = vmatpush.msra.mxu0 %v1005
    %1105 = vmatpush.msra.mxu0 %v1001
    %1106 = vmatmul.f32.gmra.mxu0 %v1016
    %v1107 = vpop.f32.mrf.mxu0
    %v1108 = vadd.f32 0.0, %v1107
    %1109 = vdwg.mxu0
    %v1110 = vsel %vm474, %v1048, 0.0
    %v1111 = vsel %vm474, %v1068, 0.0
    %v1112 = vadd.f32 %v1110, %v1111
    %v1113 = vsel %vm474, %v1088, 0.0
    %v1114 = vadd.f32 %v1112, %v1113
    %v1115 = vsel %vm474, %v1108, 0.0
    %v1116 = vadd.f32 %v1114, %v1115
    %1117 = vadd.xlane.f32.xlu0 %v1116
    %v1118 = vpop.xlane.xlu0 %1117
    %v1119 = vmul.f32 %v1118, 0.001953125
    %v1120 = vsub.f32 %v1048, %v1119
    %v1121 = vsub.f32 %v1068, %v1119
    %v1122 = vsub.f32 %v1088, %v1119
    %v1123 = vsub.f32 %v1108, %v1119
    %v1124 = vmul.f32 %v1120, %v1120
    %v1125 = vmul.f32 %v1121, %v1121
    %v1126 = vmul.f32 %v1122, %v1122
    %v1127 = vmul.f32 %v1123, %v1123
    %v1128 = vsel %vm474, %v1124, 0.0
    %v1129 = vsel %vm474, %v1125, 0.0
    %v1130 = vadd.f32 %v1128, %v1129
    %v1131 = vsel %vm474, %v1126, 0.0
    %v1132 = vadd.f32 %v1130, %v1131
    %v1133 = vsel %vm474, %v1127, 0.0
    %v1134 = vadd.f32 %v1132, %v1133
    %1135 = vadd.xlane.f32.xlu0 %v1134
    %v1136 = vpop.xlane.xlu0 %1135
    %v1137 = vmul.f32 %v1136, 0.001953125
    %v1138 = vadd.f32 %v1137, 1e-05
    %v1139 = vrsqrt.pop %v1138
    %v1140 = vmul.f32 %v1139, %v1138
    %v1141 = vmul.f32 %v1140, %v1139
    %v1142 = vmul.f32 0.5, %v1141
    %v1143 = vsub.f32 1.5, %v1142
    %v1144 = vmul.f32 %v1139, %v1143
    %vm1145 = vweird.f32 %v1138
    %vm1146 = vweird.f32 %v1139
    %vm1147 = vmor %vm1145, %vm1146
    %v1148 = vsel %vm1147, %v1139, %v1144
    %v1149 = vmul.f32 %v124, %v1148
    %1151 = vset.pattern.permute.xlu0 2
    %1152 = vperm.xlu0 %1151, %v1149
    %v1153 = vpop.permute.xlu0 %1152
    %v1155 = vmul.f32 %v1120, %v1153
    %v1156 = vmul.f32 %v1121, %v1153
    %v1157 = vmul.f32 %v1122, %v1153
    %v1158 = vmul.f32 %v1123, %v1153
    %1159 = vset.pattern.permute.xlu0 3
    %1160 = vperm.xlu0 %1159, %v124
    %v1161 = vpop.permute.xlu0 %1160
    %v1163 = vadd.f32 %v1155, %v1161
    %v1164 = vadd.f32 %v1156, %v1161
    %v1165 = vadd.f32 %v1157, %v1161
    %v1166 = vadd.f32 %v1158, %v1161
    %v1171 = vrot.slane %v1164, 4
    %v1172 = vrot.slane %v1166, 4
    %v1173 = vsel %vm474, %v1163, %v1171
    %v1174 = vsel %vm474, %v1165, %v1172
    %v1177 = vadd.f32 %v73, %v1173
    %v1178 = vadd.f32 %v74, %v1174
    %v1179 = vmul.f32 %v1177, 0.5
    %v1180 = vmul.f32 %v1178, 0.5
    %v1181 = vmul.f32 %v1177, 0.70710677
    %v1182 = vmul.f32 %v1178, 0.70710677
    %v1183 = vmul.f32 %v1181, %v1181
    %v1184 = vmin.f32 16.0, %v1183
    %v1185 = vmul.f32 %v1184, 2.1237322e-06
    %v1186 = vadd.f32 %v1185, 0.00028619796
    %v1187 = vmul.f32 %v1184, %v1186
    %v1188 = vadd.f32 %v1187, 0.0036580483
    %v1189 = vmul.f32 %v1184, %v1188
    %v1190 = vadd.f32 %v1189, 0.05243302
    %v1191 = vmul.f32 %v1184, %v1190
    %v1192 = vadd.f32 %v1191, 0.18741608
    %v1193 = vmul.f32 %v1184, %v1192
    %v1194 = vadd.f32 %v1193, 1.1283791
    %v1195 = vmul.f32 %v1181, %v1194
    %v1196 = vmul.f32 %v1184, 3.8918573e-05
    %v1197 = vadd.f32 %v1196, 0.001143296
    %v1198 = vmul.f32 %v1184, %v1197
    %v1199 = vadd.f32 %v1198, 0.014752088
    %v1200 = vmul.f32 %v1184, %v1199
    %v1201 = vadd.f32 %v1200, 0.112945676
    %v1202 = vmul.f32 %v1184, %v1201
    %v1203 = vadd.f32 %v1202, 0.4994258
    %v1204 = vmul.f32 %v1184, %v1203
    %v1205 = vadd.f32 %v1204, 1.0
    %v1206 = vrcp.pop %v1205
    %v1207 = vmul.f32 %v1205, %v1206
    %v1208 = vsub.f32 1.0, %v1207
    %v1209 = vmul.f32 %v1206, %v1208
    %v1210 = vadd.f32 %v1206, %v1209
    %vm1211 = vweird.f32 %v1205
    %vm1212 = vweird.f32 %v1206
    %vm1213 = vmor %vm1211, %vm1212
    %v1214 = vsel %vm1213, %v1206, %v1210
    %v1215 = vand.u32 2147483647, %v1205
    %vm1216 = vcmp.eq.f32.partialorder %v1215, 8.507059e+37
    %v1217 = vand.u32 %v1205, 2147483648
    %v1218 = vor.u32 1.1754944e-38, %v1217
    %v1219 = vsel %vm1216, %v1218, %v1214
    %v1220 = vmul.f32 %v1195, %v1219
    %v1221 = vmin.f32 %v1220, 1.0
    %v1222 = vmax.f32 %v1221, -1.0
    %v1223 = vmul.f32 %v1182, %v1182
    %v1224 = vmin.f32 16.0, %v1223
    %v1225 = vmul.f32 %v1224, 2.1237322e-06
    %v1226 = vadd.f32 %v1225, 0.00028619796
    %v1227 = vmul.f32 %v1224, %v1226
    %v1228 = vadd.f32 %v1227, 0.0036580483
    %v1229 = vmul.f32 %v1224, %v1228
    %v1230 = vadd.f32 %v1229, 0.05243302
    %v1231 = vmul.f32 %v1224, %v1230
    %v1232 = vadd.f32 %v1231, 0.18741608
    %v1233 = vmul.f32 %v1224, %v1232
    %v1234 = vadd.f32 %v1233, 1.1283791
    %v1235 = vmul.f32 %v1182, %v1234
    %v1236 = vmul.f32 %v1224, 3.8918573e-05
    %v1237 = vadd.f32 %v1236, 0.001143296
    %v1238 = vmul.f32 %v1224, %v1237
    %v1239 = vadd.f32 %v1238, 0.014752088
    %v1240 = vmul.f32 %v1224, %v1239
    %v1241 = vadd.f32 %v1240, 0.112945676
    %v1242 = vmul.f32 %v1224, %v1241
    %v1243 = vadd.f32 %v1242, 0.4994258
    %v1244 = vmul.f32 %v1224, %v1243
    %v1245 = vadd.f32 %v1244, 1.0
    %v1246 = vrcp.pop %v1245
    %v1247 = vmul.f32 %v1245, %v1246
    %v1248 = vsub.f32 1.0, %v1247
    %v1249 = vmul.f32 %v1246, %v1248
    %v1250 = vadd.f32 %v1246, %v1249
    %vm1251 = vweird.f32 %v1245
    %vm1252 = vweird.f32 %v1246
    %vm1253 = vmor %vm1251, %vm1252
    %v1254 = vsel %vm1253, %v1246, %v1250
    %v1255 = vand.u32 2147483647, %v1245
    %vm1256 = vcmp.eq.f32.partialorder %v1255, 8.507059e+37
    %v1257 = vand.u32 %v1245, 2147483648
    %v1258 = vor.u32 1.1754944e-38, %v1257
    %v1259 = vsel %vm1256, %v1258, %v1254
    %v1260 = vmul.f32 %v1235, %v1259
    %v1261 = vmin.f32 %v1260, 1.0
    %v1262 = vmax.f32 %v1261, -1.0
    %v1263 = vadd.f32 %v1222, 1.0
    %v1264 = vadd.f32 %v1262, 1.0
    %v1265 = vmul.f32 %v1179, %v1263
    %v1266 = vmul.f32 %v1180, %v1264
    %1267 = vst [vmem:[#allocation10] sm:$0xff] %v1265
    %1268 = vst [vmem:[#allocation10 + $0x8] sm:$0xff] %v1266
    // Predicated region
    $region34: #{tpu_custom_call.1} parent=1 // pred_check
      _
    $region35: #{tpu_custom_call.1} parent=1 // pred_check_branch
      %1270 = sbr.rel (0) target = $region37
    $region36: #{tpu_custom_call.1} parent=1 // pred_region
      %1272 = vsyncadd [#allocation4], 0
      %s1274 = sshll.u32 [#allocation10], 4
      %s1275 = int_to_ptr.vmem [resolvable:$true] %s1274
      %s1276 = sshll.u32 %s4, 4
      %s1277 = int_to_ptr.hbm [resolvable:$true] %s1276
      %1279 = dma.vmem_to_hbm [thread:$0]  %s1275, 256, %s1277, [#allocation4]
    $region37: #{tpu_custom_call.1} parent=1 // pred_fallthru
      _
    // Predicated region
    $region38: #{tpu_custom_call.1} parent=1 // pred_check
      _
    $region39: #{tpu_custom_call.1} parent=1 // pred_check_branch
      %1281 = sbr.rel (0) target = $region41
    $region40: #{tpu_custom_call.1} parent=1 // pred_region
      %1283 = dma.done [#allocation4], 256
    $region41: #{tpu_custom_call.1} parent=1 // pred_fallthru
      _
    %1284 = vsyncpa [#allocation3], 1
    %1285 = vsyncpa [#allocation6], 1
    %1286 = vsyncpa [#allocation9], 1
    %1287 = vsyncpa [#allocation4], 1

</llo_original>
